<compile_context>
chip_gen: v6e
topology: v6e:2x2x1
jax: 0.10.0
libtpu: 0.0.40
codegen_flags: <defaults>
</compile_context>

<pallas_src>
from functools import partial

import jax
import jax.numpy as jnp
from jax import lax
from jax.experimental import pallas as pl
from jax.experimental.pallas import tpu as pltpu


def irblock_kernel(x_ref,
                   bn0_s_ref, bn0_b_ref,
                   w1_ref, bn1_b_ref,
                   w2_ref, bn2_b_ref,
                   fc1_w_ref, fc1_b_ref,
                   fc2_wt_ref, fc2_b_ref,
                   slopes_ref,
                   o_ref,
                   win_ref, line_ref,
                   *, W):
    Bi, C, HW = x_ref.shape
    PADL = W + 1                       # halo on each end of the flattened axis

    a = slopes_ref[0]                  # shared PReLU slope (self.prelu, used twice)
    se_a = slopes_ref[1]               # SE-internal PReLU slope

    # Lane x-coordinate (period W) for the row-boundary masks of the +-1
    # horizontal taps.  Computed once per grid step.
    col = lax.broadcasted_iota(jnp.int32, (1, HW), 1)
    xx = (col & (W - 1)) if (W & (W - 1)) == 0 else (col % W)

    # Zero the halo of the line buffer (scratch persistence across a
    # megacore-sharded "parallel" grid axis is not guaranteed, so re-zero each
    # step; this is ~2 KiB, negligible).  The interior is fully overwritten
    # before every use.
    line_ref[:, 0:PADL] = jnp.zeros((C, PADL), jnp.bfloat16)
    line_ref[:, PADL + HW:2 * PADL + HW] = jnp.zeros((C, PADL), jnp.bfloat16)

    def build_win(src_bf16, lane_off):
        # Transposed im2col: tap j = ky*3+kx writes rows [j*C, (j+1)*C) of the
        # bf16 win buffer; every store is a lane-dense (C, HW) slab at an
        # aligned offset.  Vertical (+-W) shifts get their zero padding from
        # the halo; horizontal (+-1) shifts additionally mask the row wrap.
        line_ref[:, PADL:PADL + HW] = src_bf16
        for ky in range(3):
            for kx in range(3):
                dy, dx = ky - 1, kx - 1
                s = dy * W + dx
                t = line_ref[:, PADL + s:PADL + s + HW]
                if dx == 1:
                    t = jnp.where(xx < W - 1, t, jnp.zeros_like(t))
                elif dx == -1:
                    t = jnp.where(xx >= 1, t, jnp.zeros_like(t))
                j = ky * 3 + kx
                win_ref[j * C:(j + 1) * C, lane_off:lane_off + HW] = t

    # ---- bn0 (kept elementwise: the zero padding happens AFTER bn0 in the
    # reference, so its bias cannot be folded into conv1 on border pixels),
    # then im2col for conv1 ----
    bn0_s = bn0_s_ref[...]             # (C, 1)
    bn0_b = bn0_b_ref[...]
    for b in range(Bi):
        a0 = x_ref[b] * bn0_s + bn0_b                       # (C, HW) f32
        build_win(a0.astype(jnp.bfloat16), b * HW)

    # ---- conv1 (bn1 scale folded into w1) + bn1 bias + PReLU ----
    t1 = jnp.dot(w1_ref[...], win_ref[...],
                 preferred_element_type=jnp.float32) + bn1_b_ref[...]
    t1 = jnp.where(t1 >= 0, t1, a * t1)                     # (C, Bi*HW) f32

    # ---- conv2 (bn2 scale folded into w2) + bn2 bias ----
    for b in range(Bi):
        build_win(t1[:, b * HW:(b + 1) * HW].astype(jnp.bfloat16), b * HW)
    t2 = jnp.dot(w2_ref[...], win_ref[...],
                 preferred_element_type=jnp.float32) + bn2_b_ref[...]

    # ---- SE (VPU broadcast + reduce: the 32x2 / 2x32 FCs are far too small
    # for the MXU), residual add, final PReLU ----
    fc1_w = fc1_w_ref[...]             # (C, hidden)
    fc1_b = fc1_b_ref[...]             # (1, hidden)
    fc2_wt = fc2_wt_ref[...]           # (C, hidden)  == fc2_w.T
    fc2_b = fc2_b_ref[...]             # (C, 1)
    for b in range(Bi):
        t2b = t2[:, b * HW:(b + 1) * HW]                    # (C, HW)
        y = jnp.mean(t2b, axis=1, keepdims=True)            # (C, 1) global pool
        h = jnp.sum(y * fc1_w, axis=0, keepdims=True) + fc1_b      # (1, hidden)
        h = jnp.where(h >= 0, h, se_a * h)
        gate = jnp.sum(h * fc2_wt, axis=1, keepdims=True) + fc2_b  # (C, 1)
        gate = jax.nn.sigmoid(gate)
        out = t2b * gate + x_ref[b]                         # residual (pre-bn0 x)
        o_ref[b] = jnp.where(out >= 0, out, a * out)


def _pick_images_per_step(B):
    """Largest divisor of B that still leaves >= 2 grid steps (so the
    "parallel" batch axis can split across both v7x TensorCores), capped at 4
    to keep vreg / scratch pressure low."""
    best = 1
    for cand in range(1, min(B, 4) + 1):
        if B % cand == 0 and B // cand >= 2:
            best = cand
    return best


def irblock_forward(x_nchw, p):
    """x_nchw: (B, C, H, W) float32.  Returns (B, C, H, W) float32."""
    B, C, H, W = x_nchw.shape
    HW = H * W
    bi = _pick_images_per_step(B)

    # Channels-major kernel I/O: (B, C, H*W) is a free contiguous reshape of
    # NCHW -- no transposes around the pallas_call.
    x = x_nchw.reshape(B, C, HW).astype(jnp.float32)

    def colv(v):                       # (C,) -> (C, 1): broadcasts across lanes
        return v.reshape(-1, 1).astype(jnp.float32)

    def rowv(v):                       # (n,) -> (1, n)
        return v.reshape(1, -1).astype(jnp.float32)

    # OIHW -> (co, ky, kx, ci) -> (C, 9*C): K-order (ky, kx, ci) matches the
    # im2col rows.  bn1/bn2 scales fold into the output-channel rows; weights
    # are cast to bf16 for the MXU.
    w1_mat = jnp.transpose(p["w1"], (0, 2, 3, 1)).reshape(C, 9 * C)
    w2_mat = jnp.transpose(p["w2"], (0, 2, 3, 1)).reshape(C, 9 * C)
    w1f = (w1_mat * p["bn1_s"][:, None]).astype(jnp.bfloat16)
    w2f = (w2_mat * p["bn2_s"][:, None]).astype(jnp.bfloat16)

    slopes = jnp.array([p["a"], p["se_a"]], jnp.float32)           # SMEM scalars

    params = [
        colv(p["bn0_s"]), colv(p["bn0_b"]),
        w1f, colv(p["bn1_b"]),
        w2f, colv(p["bn2_b"]),
        p["fc1_w"].astype(jnp.float32), rowv(p["fc1_b"]),
        jnp.transpose(p["fc2_w"]).astype(jnp.float32), colv(p["fc2_b"]),
    ]

    def _param_spec(arr):
        return pl.BlockSpec(arr.shape, lambda b, _nd=arr.ndim: (0,) * _nd)

    out = pl.pallas_call(
        partial(irblock_kernel, W=W),
        out_shape=jax.ShapeDtypeStruct((B, C, HW), jnp.float32),
        grid_spec=pltpu.PrefetchScalarGridSpec(
            num_scalar_prefetch=0,
            grid=(B // bi,),
            in_specs=[pl.BlockSpec((bi, C, HW), lambda b: (b, 0, 0))]
                     + [_param_spec(q) for q in params]
                     + [pl.BlockSpec(memory_space=pltpu.MemorySpace.SMEM)],
            out_specs=pl.BlockSpec((bi, C, HW), lambda b: (b, 0, 0)),
            scratch_shapes=[
                pltpu.VMEM((9 * C, bi * HW), jnp.bfloat16),        # im2col (bf16)
                pltpu.VMEM((C, HW + 2 * (W + 1)), jnp.bfloat16),   # zero-haloed line
            ],
        ),
        compiler_params=pltpu.CompilerParams(dimension_semantics=("parallel",)),
    )(x, *params, slopes)

    return out.reshape(B, C, H, W)


# ------------------------- pure-JAX reference -------------------------------
def irblock_reference(x, p):
    def bn(t, s, b):
        return t * s[None, :, None, None] + b[None, :, None, None]

    def conv(t, w):
        return lax.conv_general_dilated(
            t, w, window_strides=(1, 1), padding=((1, 1), (1, 1)),
            dimension_numbers=("NCHW", "OIHW", "NCHW"))

    def prelu(t, a):
        return jnp.where(t >= 0, t, a * t)

    out = bn(x, p["bn0_s"], p["bn0_b"])
    out = conv(out, p["w1"])
    out = bn(out, p["bn1_s"], p["bn1_b"])
    out = prelu(out, p["a"])
    out = conv(out, p["w2"])
    out = bn(out, p["bn2_s"], p["bn2_b"])
    # SE
    y = out.mean(axis=(2, 3))                      # (B, C)
    y = y @ p["fc1_w"] + p["fc1_b"]
    y = prelu(y, p["se_a"])
    y = y @ p["fc2_w"] + p["fc2_b"]
    y = jax.nn.sigmoid(y)
    out = out * y[:, :, None, None]
    out = out + x
    out = prelu(out, p["a"])
    return out


# ------------------------- deterministic params -----------------------------
def make_params(key, C, reduction=16):
    hidden = C // reduction
    ks = jax.random.split(key, 12)

    def bn_fold(k, c):
        k1, k2, k3, k4 = jax.random.split(k, 4)
        gamma = 1.0 + 0.1 * jax.random.normal(k1, (c,))
        beta = 0.1 * jax.random.normal(k2, (c,))
        mean = 0.1 * jax.random.normal(k3, (c,))
        var = jax.nn.softplus(jax.random.normal(k4, (c,))) + 0.5
        scale = gamma / jnp.sqrt(var + 1e-5)
        bias = beta - mean * scale
        return scale.astype(jnp.float32), bias.astype(jnp.float32)

    bn0_s, bn0_b = bn_fold(ks[0], C)
    bn1_s, bn1_b = bn_fold(ks[1], C)
    bn2_s, bn2_b = bn_fold(ks[2], C)

    p = dict(
        bn0_s=bn0_s, bn0_b=bn0_b,
        w1=0.1 * jax.random.normal(ks[3], (C, C, 3, 3), jnp.float32),   # OIHW
        bn1_s=bn1_s, bn1_b=bn1_b,
        a=jnp.float32(0.25),                                            # nn.PReLU() default
        w2=0.1 * jax.random.normal(ks[4], (C, C, 3, 3), jnp.float32),
        bn2_s=bn2_s, bn2_b=bn2_b,
        fc1_w=0.2 * jax.random.normal(ks[5], (C, hidden), jnp.float32),
        fc1_b=0.1 * jax.random.normal(ks[6], (hidden,), jnp.float32),
        se_a=jnp.float32(0.25),
        fc2_w=0.2 * jax.random.normal(ks[7], (hidden, C), jnp.float32),
        fc2_b=0.1 * jax.random.normal(ks[8], (C,), jnp.float32),
    )
    return p


if __name__ == "__main__":
    B, C, H, W = 2, 32, 16, 16                     # inplanes == planes == 32
    key = jax.random.PRNGKey(0)
    k_x, k_p = jax.random.split(key)
    x = jax.random.normal(k_x, (B, C, H, W), jnp.float32)
    params = make_params(k_p, C)

    out = jax.block_until_ready(irblock_forward(x, params))
    ref = jax.block_until_ready(irblock_reference(x, params))

    max_diff = float(jnp.max(jnp.abs(out - ref)))
    scale = float(jnp.max(jnp.abs(ref))) + 1.0
    # bf16 MXU operands vs. the pure-f32 reference: allow 2e-2 * scale.
    if not (out.shape == (B, C, H, W) and max_diff < 2e-2 * scale):
        raise AssertionError(f"mismatch vs reference: max_diff={max_diff}")

    print("KERNEL_OK")
</pallas_src>

<mosaic_0001>
module attributes {stable_mosaic.version = 11 : i64} {
  func.func @irblock_kernel(%arg0: i32, %arg1: memref<1x32x256xf32, #tpu.memory_space<vmem>>, %arg2: memref<32x1xf32, #tpu.memory_space<vmem>>, %arg3: memref<32x1xf32, #tpu.memory_space<vmem>>, %arg4: memref<32x288xbf16, #tpu.memory_space<vmem>>, %arg5: memref<32x1xf32, #tpu.memory_space<vmem>>, %arg6: memref<32x288xbf16, #tpu.memory_space<vmem>>, %arg7: memref<32x1xf32, #tpu.memory_space<vmem>>, %arg8: memref<32x2xf32, #tpu.memory_space<vmem>>, %arg9: memref<1x2xf32, #tpu.memory_space<vmem>>, %arg10: memref<32x2xf32, #tpu.memory_space<vmem>>, %arg11: memref<32x1xf32, #tpu.memory_space<vmem>>, %arg12: memref<2xf32, #tpu.memory_space<smem>>, %arg13: memref<1x32x256xf32, #tpu.memory_space<vmem>>, %arg14: memref<288x256xbf16, #tpu.memory_space<vmem>>, %arg15: memref<32x290xbf16, #tpu.memory_space<vmem>>) attributes {dimension_semantics = [#tpu.dimension_semantics<parallel>], iteration_bounds = array<i64: 2>, scalar_prefetch = 0 : i64, scratch_operands = 2 : i64, tpu.core_type = #tpu.core_type<tc>, window_params = [{transform_indices = @transform_0, window_bounds = array<i64: 1, 32, 256>}, {pipeline_mode = #tpu.pipeline_mode<synchronous>, transform_indices = @transform_1, window_bounds = array<i64: 32, 1>}, {pipeline_mode = #tpu.pipeline_mode<synchronous>, transform_indices = @transform_2, window_bounds = array<i64: 32, 1>}, {pipeline_mode = #tpu.pipeline_mode<synchronous>, transform_indices = @transform_3, window_bounds = array<i64: 32, 288>}, {pipeline_mode = #tpu.pipeline_mode<synchronous>, transform_indices = @transform_4, window_bounds = array<i64: 32, 1>}, {pipeline_mode = #tpu.pipeline_mode<synchronous>, transform_indices = @transform_5, window_bounds = array<i64: 32, 288>}, {pipeline_mode = #tpu.pipeline_mode<synchronous>, transform_indices = @transform_6, window_bounds = array<i64: 32, 1>}, {pipeline_mode = #tpu.pipeline_mode<synchronous>, transform_indices = @transform_7, window_bounds = array<i64: 32, 2>}, {pipeline_mode = #tpu.pipeline_mode<synchronous>, transform_indices = @transform_8, window_bounds = array<i64: 1, 2>}, {pipeline_mode = #tpu.pipeline_mode<synchronous>, transform_indices = @transform_9, window_bounds = array<i64: 32, 2>}, {pipeline_mode = #tpu.pipeline_mode<synchronous>, transform_indices = @transform_10, window_bounds = array<i64: 32, 1>}, {transform_indices = @transform_11, window_bounds = array<i64: 2>}, {transform_indices = @transform_12, window_bounds = array<i64: 1, 32, 256>}]} {
    %c0 = arith.constant 0 : index
    %0 = memref.load %arg12[%c0] : memref<2xf32, #tpu.memory_space<smem>>
    %c1 = arith.constant 1 : index
    %1 = memref.load %arg12[%c1] : memref<2xf32, #tpu.memory_space<smem>>
    %2 = tpu.iota {dimensions = array<i32: 1>} : vector<1x256xi32>
    %c15_i32 = arith.constant 15 : i32
    %3 = vector.broadcast %c15_i32 : i32 to vector<1x256xi32>
    %4 = arith.andi %2, %3 : vector<1x256xi32>
    %cst = arith.constant 0.000000e+00 : bf16
    %5 = vector.broadcast %cst : bf16 to vector<32x17xbf16>
    %c0_0 = arith.constant 0 : index
    %c0_1 = arith.constant 0 : index
    %6 = vector.load %arg15[%c0_0, %c0_1] : memref<32x290xbf16, #tpu.memory_space<vmem>>, vector<32x17xbf16>
    tpu.vector_store %arg15[%c0_0, %c0_1], %5 {strides = array<i32>} : memref<32x290xbf16, #tpu.memory_space<vmem>>, vector<32x17xbf16>,
    %cst_2 = arith.constant 0.000000e+00 : bf16
    %7 = vector.broadcast %cst_2 : bf16 to vector<32x17xbf16>
    %c0_3 = arith.constant 0 : index
    %c273 = arith.constant 273 : index
    %8 = vector.load %arg15[%c0_3, %c273] : memref<32x290xbf16, #tpu.memory_space<vmem>>, vector<32x17xbf16>
    tpu.vector_store %arg15[%c0_3, %c273], %7 {strides = array<i32>} : memref<32x290xbf16, #tpu.memory_space<vmem>>, vector<32x17xbf16>,
    %c0_4 = arith.constant 0 : index
    %c0_5 = arith.constant 0 : index
    %9 = vector.load %arg2[%c0_4, %c0_5] : memref<32x1xf32, #tpu.memory_space<vmem>>, vector<32x1xf32>
    %c0_6 = arith.constant 0 : index
    %c0_7 = arith.constant 0 : index
    %10 = vector.load %arg3[%c0_6, %c0_7] : memref<32x1xf32, #tpu.memory_space<vmem>>, vector<32x1xf32>
    %c0_8 = arith.constant 0 : index
    %c0_9 = arith.constant 0 : index
    %c0_10 = arith.constant 0 : index
    %11 = vector.load %arg1[%c0_8, %c0_9, %c0_10] : memref<1x32x256xf32, #tpu.memory_space<vmem>>, vector<1x32x256xf32>
    %12 = vector.shape_cast %11 : vector<1x32x256xf32> to vector<32x256xf32>
    %13 = vector.broadcast %9 : vector<32x1xf32> to vector<32x256xf32>
    %14 = arith.mulf %12, %13 : vector<32x256xf32>
    %15 = vector.broadcast %10 : vector<32x1xf32> to vector<32x256xf32>
    %16 = arith.addf %14, %15 : vector<32x256xf32>
    %17 = arith.truncf %16 : vector<32x256xf32> to vector<32x256xbf16>
    %c0_11 = arith.constant 0 : index
    %c17 = arith.constant 17 : index
    %18 = vector.load %arg15[%c0_11, %c17] : memref<32x290xbf16, #tpu.memory_space<vmem>>, vector<32x256xbf16>
    tpu.vector_store %arg15[%c0_11, %c17], %17 {strides = array<i32>} : memref<32x290xbf16, #tpu.memory_space<vmem>>, vector<32x256xbf16>,
    %c0_12 = arith.constant 0 : index
    %c0_13 = arith.constant 0 : index
    %19 = vector.load %arg15[%c0_12, %c0_13] : memref<32x290xbf16, #tpu.memory_space<vmem>>, vector<32x256xbf16>
    %c1_i32 = arith.constant 1 : i32
    %20 = vector.broadcast %c1_i32 : i32 to vector<1x256xi32>
    %21 = arith.cmpi sge, %4, %20 : vector<1x256xi32>
    %cst_14 = arith.constant 0.000000e+00 : bf16
    %22 = vector.broadcast %cst_14 : bf16 to vector<32x256xbf16>
    %23 = vector.shape_cast %21 : vector<1x256xi1> to vector<1x256xi1>
    %24 = vector.broadcast %23 : vector<1x256xi1> to vector<32x256xi1>
    %25 = arith.select %24, %19, %22 : vector<32x256xi1>, vector<32x256xbf16>
    %c0_15 = arith.constant 0 : index
    %c0_16 = arith.constant 0 : index
    %26 = vector.load %arg14[%c0_15, %c0_16] : memref<288x256xbf16, #tpu.memory_space<vmem>>, vector<32x256xbf16>
    tpu.vector_store %arg14[%c0_15, %c0_16], %25 {strides = array<i32>} : memref<288x256xbf16, #tpu.memory_space<vmem>>, vector<32x256xbf16>,
    %c0_17 = arith.constant 0 : index
    %c1_18 = arith.constant 1 : index
    %27 = vector.load %arg15[%c0_17, %c1_18] : memref<32x290xbf16, #tpu.memory_space<vmem>>, vector<32x256xbf16>
    %c32 = arith.constant 32 : index
    %c0_19 = arith.constant 0 : index
    %28 = vector.load %arg14[%c32, %c0_19] : memref<288x256xbf16, #tpu.memory_space<vmem>>, vector<32x256xbf16>
    tpu.vector_store %arg14[%c32, %c0_19], %27 {strides = array<i32>} : memref<288x256xbf16, #tpu.memory_space<vmem>>, vector<32x256xbf16>,
    %c0_20 = arith.constant 0 : index
    %c2 = arith.constant 2 : index
    %29 = vector.load %arg15[%c0_20, %c2] : memref<32x290xbf16, #tpu.memory_space<vmem>>, vector<32x256xbf16>
    %c15_i32_21 = arith.constant 15 : i32
    %30 = vector.broadcast %c15_i32_21 : i32 to vector<1x256xi32>
    %31 = arith.cmpi slt, %4, %30 : vector<1x256xi32>
    %cst_22 = arith.constant 0.000000e+00 : bf16
    %32 = vector.broadcast %cst_22 : bf16 to vector<32x256xbf16>
    %33 = vector.shape_cast %31 : vector<1x256xi1> to vector<1x256xi1>
    %34 = vector.broadcast %33 : vector<1x256xi1> to vector<32x256xi1>
    %35 = arith.select %34, %29, %32 : vector<32x256xi1>, vector<32x256xbf16>
    %c64 = arith.constant 64 : index
    %c0_23 = arith.constant 0 : index
    %36 = vector.load %arg14[%c64, %c0_23] : memref<288x256xbf16, #tpu.memory_space<vmem>>, vector<32x256xbf16>
    tpu.vector_store %arg14[%c64, %c0_23], %35 {strides = array<i32>} : memref<288x256xbf16, #tpu.memory_space<vmem>>, vector<32x256xbf16>,
    %c0_24 = arith.constant 0 : index
    %c16 = arith.constant 16 : index
    %37 = vector.load %arg15[%c0_24, %c16] : memref<32x290xbf16, #tpu.memory_space<vmem>>, vector<32x256xbf16>
    %c1_i32_25 = arith.constant 1 : i32
    %38 = vector.broadcast %c1_i32_25 : i32 to vector<1x256xi32>
    %39 = arith.cmpi sge, %4, %38 : vector<1x256xi32>
    %cst_26 = arith.constant 0.000000e+00 : bf16
    %40 = vector.broadcast %cst_26 : bf16 to vector<32x256xbf16>
    %41 = vector.shape_cast %39 : vector<1x256xi1> to vector<1x256xi1>
    %42 = vector.broadcast %41 : vector<1x256xi1> to vector<32x256xi1>
    %43 = arith.select %42, %37, %40 : vector<32x256xi1>, vector<32x256xbf16>
    %c96 = arith.constant 96 : index
    %c0_27 = arith.constant 0 : index
    %44 = vector.load %arg14[%c96, %c0_27] : memref<288x256xbf16, #tpu.memory_space<vmem>>, vector<32x256xbf16>
    tpu.vector_store %arg14[%c96, %c0_27], %43 {strides = array<i32>} : memref<288x256xbf16, #tpu.memory_space<vmem>>, vector<32x256xbf16>,
    %c0_28 = arith.constant 0 : index
    %c17_29 = arith.constant 17 : index
    %45 = vector.load %arg15[%c0_28, %c17_29] : memref<32x290xbf16, #tpu.memory_space<vmem>>, vector<32x256xbf16>
    %c128 = arith.constant 128 : index
    %c0_30 = arith.constant 0 : index
    %46 = vector.load %arg14[%c128, %c0_30] : memref<288x256xbf16, #tpu.memory_space<vmem>>, vector<32x256xbf16>
    tpu.vector_store %arg14[%c128, %c0_30], %45 {strides = array<i32>} : memref<288x256xbf16, #tpu.memory_space<vmem>>, vector<32x256xbf16>,
    %c0_31 = arith.constant 0 : index
    %c18 = arith.constant 18 : index
    %47 = vector.load %arg15[%c0_31, %c18] : memref<32x290xbf16, #tpu.memory_space<vmem>>, vector<32x256xbf16>
    %c15_i32_32 = arith.constant 15 : i32
    %48 = vector.broadcast %c15_i32_32 : i32 to vector<1x256xi32>
    %49 = arith.cmpi slt, %4, %48 : vector<1x256xi32>
    %cst_33 = arith.constant 0.000000e+00 : bf16
    %50 = vector.broadcast %cst_33 : bf16 to vector<32x256xbf16>
    %51 = vector.shape_cast %49 : vector<1x256xi1> to vector<1x256xi1>
    %52 = vector.broadcast %51 : vector<1x256xi1> to vector<32x256xi1>
    %53 = arith.select %52, %47, %50 : vector<32x256xi1>, vector<32x256xbf16>
    %c160 = arith.constant 160 : index
    %c0_34 = arith.constant 0 : index
    %54 = vector.load %arg14[%c160, %c0_34] : memref<288x256xbf16, #tpu.memory_space<vmem>>, vector<32x256xbf16>
    tpu.vector_store %arg14[%c160, %c0_34], %53 {strides = array<i32>} : memref<288x256xbf16, #tpu.memory_space<vmem>>, vector<32x256xbf16>,
    %c0_35 = arith.constant 0 : index
    %c32_36 = arith.constant 32 : index
    %55 = vector.load %arg15[%c0_35, %c32_36] : memref<32x290xbf16, #tpu.memory_space<vmem>>, vector<32x256xbf16>
    %c1_i32_37 = arith.constant 1 : i32
    %56 = vector.broadcast %c1_i32_37 : i32 to vector<1x256xi32>
    %57 = arith.cmpi sge, %4, %56 : vector<1x256xi32>
    %cst_38 = arith.constant 0.000000e+00 : bf16
    %58 = vector.broadcast %cst_38 : bf16 to vector<32x256xbf16>
    %59 = vector.shape_cast %57 : vector<1x256xi1> to vector<1x256xi1>
    %60 = vector.broadcast %59 : vector<1x256xi1> to vector<32x256xi1>
    %61 = arith.select %60, %55, %58 : vector<32x256xi1>, vector<32x256xbf16>
    %c192 = arith.constant 192 : index
    %c0_39 = arith.constant 0 : index
    %62 = vector.load %arg14[%c192, %c0_39] : memref<288x256xbf16, #tpu.memory_space<vmem>>, vector<32x256xbf16>
    tpu.vector_store %arg14[%c192, %c0_39], %61 {strides = array<i32>} : memref<288x256xbf16, #tpu.memory_space<vmem>>, vector<32x256xbf16>,
    %c0_40 = arith.constant 0 : index
    %c33 = arith.constant 33 : index
    %63 = vector.load %arg15[%c0_40, %c33] : memref<32x290xbf16, #tpu.memory_space<vmem>>, vector<32x256xbf16>
    %c224 = arith.constant 224 : index
    %c0_41 = arith.constant 0 : index
    %64 = vector.load %arg14[%c224, %c0_41] : memref<288x256xbf16, #tpu.memory_space<vmem>>, vector<32x256xbf16>
    tpu.vector_store %arg14[%c224, %c0_41], %63 {strides = array<i32>} : memref<288x256xbf16, #tpu.memory_space<vmem>>, vector<32x256xbf16>,
    %c0_42 = arith.constant 0 : index
    %c34 = arith.constant 34 : index
    %65 = vector.load %arg15[%c0_42, %c34] : memref<32x290xbf16, #tpu.memory_space<vmem>>, vector<32x256xbf16>
    %c15_i32_43 = arith.constant 15 : i32
    %66 = vector.broadcast %c15_i32_43 : i32 to vector<1x256xi32>
    %67 = arith.cmpi slt, %4, %66 : vector<1x256xi32>
    %cst_44 = arith.constant 0.000000e+00 : bf16
    %68 = vector.broadcast %cst_44 : bf16 to vector<32x256xbf16>
    %69 = vector.shape_cast %67 : vector<1x256xi1> to vector<1x256xi1>
    %70 = vector.broadcast %69 : vector<1x256xi1> to vector<32x256xi1>
    %71 = arith.select %70, %65, %68 : vector<32x256xi1>, vector<32x256xbf16>
    %c256 = arith.constant 256 : index
    %c0_45 = arith.constant 0 : index
    %72 = vector.load %arg14[%c256, %c0_45] : memref<288x256xbf16, #tpu.memory_space<vmem>>, vector<32x256xbf16>
    tpu.vector_store %arg14[%c256, %c0_45], %71 {strides = array<i32>} : memref<288x256xbf16, #tpu.memory_space<vmem>>, vector<32x256xbf16>,
    %c0_46 = arith.constant 0 : index
    %c0_47 = arith.constant 0 : index
    %73 = vector.load %arg4[%c0_46, %c0_47] : memref<32x288xbf16, #tpu.memory_space<vmem>>, vector<32x288xbf16>
    %c0_48 = arith.constant 0 : index
    %c0_49 = arith.constant 0 : index
    %74 = vector.load %arg14[%c0_48, %c0_49] : memref<288x256xbf16, #tpu.memory_space<vmem>>, vector<288x256xbf16>
    %cst_50 = arith.constant dense<0.000000e+00> : vector<32x256xf32>
    %75 = tpu.matmul %73, %74, %cst_50 {dimension_numbers = #tpu.dot_dimension_numbers<[1], [0], [0], [1], [0, 0, 1, 1], [], []>} : vector<32x288xbf16>, vector<288x256xbf16>, vector<32x256xf32> -> vector<32x256xf32>
    %c0_51 = arith.constant 0 : index
    %c0_52 = arith.constant 0 : index
    %76 = vector.load %arg5[%c0_51, %c0_52] : memref<32x1xf32, #tpu.memory_space<vmem>>, vector<32x1xf32>
    %77 = vector.broadcast %76 : vector<32x1xf32> to vector<32x256xf32>
    %78 = arith.addf %75, %77 : vector<32x256xf32>
    %cst_53 = arith.constant 0.000000e+00 : f32
    %79 = vector.broadcast %cst_53 : f32 to vector<32x256xf32>
    %80 = arith.cmpf oge, %78, %79 : vector<32x256xf32>
    %81 = vector.broadcast %0 : f32 to vector<32x256xf32>
    %82 = arith.mulf %81, %78 : vector<32x256xf32>
    %83 = arith.select %80, %78, %82 : vector<32x256xi1>, vector<32x256xf32>
    %84 = arith.truncf %83 : vector<32x256xf32> to vector<32x256xbf16>
    %c0_54 = arith.constant 0 : index
    %c17_55 = arith.constant 17 : index
    %85 = vector.load %arg15[%c0_54, %c17_55] : memref<32x290xbf16, #tpu.memory_space<vmem>>, vector<32x256xbf16>
    tpu.vector_store %arg15[%c0_54, %c17_55], %84 {strides = array<i32>} : memref<32x290xbf16, #tpu.memory_space<vmem>>, vector<32x256xbf16>,
    %c0_56 = arith.constant 0 : index
    %c0_57 = arith.constant 0 : index
    %86 = vector.load %arg15[%c0_56, %c0_57] : memref<32x290xbf16, #tpu.memory_space<vmem>>, vector<32x256xbf16>
    %c1_i32_58 = arith.constant 1 : i32
    %87 = vector.broadcast %c1_i32_58 : i32 to vector<1x256xi32>
    %88 = arith.cmpi sge, %4, %87 : vector<1x256xi32>
    %cst_59 = arith.constant 0.000000e+00 : bf16
    %89 = vector.broadcast %cst_59 : bf16 to vector<32x256xbf16>
    %90 = vector.shape_cast %88 : vector<1x256xi1> to vector<1x256xi1>
    %91 = vector.broadcast %90 : vector<1x256xi1> to vector<32x256xi1>
    %92 = arith.select %91, %86, %89 : vector<32x256xi1>, vector<32x256xbf16>
    %c0_60 = arith.constant 0 : index
    %c0_61 = arith.constant 0 : index
    %93 = vector.load %arg14[%c0_60, %c0_61] : memref<288x256xbf16, #tpu.memory_space<vmem>>, vector<32x256xbf16>
    tpu.vector_store %arg14[%c0_60, %c0_61], %92 {strides = array<i32>} : memref<288x256xbf16, #tpu.memory_space<vmem>>, vector<32x256xbf16>,
    %c0_62 = arith.constant 0 : index
    %c1_63 = arith.constant 1 : index
    %94 = vector.load %arg15[%c0_62, %c1_63] : memref<32x290xbf16, #tpu.memory_space<vmem>>, vector<32x256xbf16>
    %c32_64 = arith.constant 32 : index
    %c0_65 = arith.constant 0 : index
    %95 = vector.load %arg14[%c32_64, %c0_65] : memref<288x256xbf16, #tpu.memory_space<vmem>>, vector<32x256xbf16>
    tpu.vector_store %arg14[%c32_64, %c0_65], %94 {strides = array<i32>} : memref<288x256xbf16, #tpu.memory_space<vmem>>, vector<32x256xbf16>,
    %c0_66 = arith.constant 0 : index
    %c2_67 = arith.constant 2 : index
    %96 = vector.load %arg15[%c0_66, %c2_67] : memref<32x290xbf16, #tpu.memory_space<vmem>>, vector<32x256xbf16>
    %c15_i32_68 = arith.constant 15 : i32
    %97 = vector.broadcast %c15_i32_68 : i32 to vector<1x256xi32>
    %98 = arith.cmpi slt, %4, %97 : vector<1x256xi32>
    %cst_69 = arith.constant 0.000000e+00 : bf16
    %99 = vector.broadcast %cst_69 : bf16 to vector<32x256xbf16>
    %100 = vector.shape_cast %98 : vector<1x256xi1> to vector<1x256xi1>
    %101 = vector.broadcast %100 : vector<1x256xi1> to vector<32x256xi1>
    %102 = arith.select %101, %96, %99 : vector<32x256xi1>, vector<32x256xbf16>
    %c64_70 = arith.constant 64 : index
    %c0_71 = arith.constant 0 : index
    %103 = vector.load %arg14[%c64_70, %c0_71] : memref<288x256xbf16, #tpu.memory_space<vmem>>, vector<32x256xbf16>
    tpu.vector_store %arg14[%c64_70, %c0_71], %102 {strides = array<i32>} : memref<288x256xbf16, #tpu.memory_space<vmem>>, vector<32x256xbf16>,
    %c0_72 = arith.constant 0 : index
    %c16_73 = arith.constant 16 : index
    %104 = vector.load %arg15[%c0_72, %c16_73] : memref<32x290xbf16, #tpu.memory_space<vmem>>, vector<32x256xbf16>
    %c1_i32_74 = arith.constant 1 : i32
    %105 = vector.broadcast %c1_i32_74 : i32 to vector<1x256xi32>
    %106 = arith.cmpi sge, %4, %105 : vector<1x256xi32>
    %cst_75 = arith.constant 0.000000e+00 : bf16
    %107 = vector.broadcast %cst_75 : bf16 to vector<32x256xbf16>
    %108 = vector.shape_cast %106 : vector<1x256xi1> to vector<1x256xi1>
    %109 = vector.broadcast %108 : vector<1x256xi1> to vector<32x256xi1>
    %110 = arith.select %109, %104, %107 : vector<32x256xi1>, vector<32x256xbf16>
    %c96_76 = arith.constant 96 : index
    %c0_77 = arith.constant 0 : index
    %111 = vector.load %arg14[%c96_76, %c0_77] : memref<288x256xbf16, #tpu.memory_space<vmem>>, vector<32x256xbf16>
    tpu.vector_store %arg14[%c96_76, %c0_77], %110 {strides = array<i32>} : memref<288x256xbf16, #tpu.memory_space<vmem>>, vector<32x256xbf16>,
    %c0_78 = arith.constant 0 : index
    %c17_79 = arith.constant 17 : index
    %112 = vector.load %arg15[%c0_78, %c17_79] : memref<32x290xbf16, #tpu.memory_space<vmem>>, vector<32x256xbf16>
    %c128_80 = arith.constant 128 : index
    %c0_81 = arith.constant 0 : index
    %113 = vector.load %arg14[%c128_80, %c0_81] : memref<288x256xbf16, #tpu.memory_space<vmem>>, vector<32x256xbf16>
    tpu.vector_store %arg14[%c128_80, %c0_81], %112 {strides = array<i32>} : memref<288x256xbf16, #tpu.memory_space<vmem>>, vector<32x256xbf16>,
    %c0_82 = arith.constant 0 : index
    %c18_83 = arith.constant 18 : index
    %114 = vector.load %arg15[%c0_82, %c18_83] : memref<32x290xbf16, #tpu.memory_space<vmem>>, vector<32x256xbf16>
    %c15_i32_84 = arith.constant 15 : i32
    %115 = vector.broadcast %c15_i32_84 : i32 to vector<1x256xi32>
    %116 = arith.cmpi slt, %4, %115 : vector<1x256xi32>
    %cst_85 = arith.constant 0.000000e+00 : bf16
    %117 = vector.broadcast %cst_85 : bf16 to vector<32x256xbf16>
    %118 = vector.shape_cast %116 : vector<1x256xi1> to vector<1x256xi1>
    %119 = vector.broadcast %118 : vector<1x256xi1> to vector<32x256xi1>
    %120 = arith.select %119, %114, %117 : vector<32x256xi1>, vector<32x256xbf16>
    %c160_86 = arith.constant 160 : index
    %c0_87 = arith.constant 0 : index
    %121 = vector.load %arg14[%c160_86, %c0_87] : memref<288x256xbf16, #tpu.memory_space<vmem>>, vector<32x256xbf16>
    tpu.vector_store %arg14[%c160_86, %c0_87], %120 {strides = array<i32>} : memref<288x256xbf16, #tpu.memory_space<vmem>>, vector<32x256xbf16>,
    %c0_88 = arith.constant 0 : index
    %c32_89 = arith.constant 32 : index
    %122 = vector.load %arg15[%c0_88, %c32_89] : memref<32x290xbf16, #tpu.memory_space<vmem>>, vector<32x256xbf16>
    %c1_i32_90 = arith.constant 1 : i32
    %123 = vector.broadcast %c1_i32_90 : i32 to vector<1x256xi32>
    %124 = arith.cmpi sge, %4, %123 : vector<1x256xi32>
    %cst_91 = arith.constant 0.000000e+00 : bf16
    %125 = vector.broadcast %cst_91 : bf16 to vector<32x256xbf16>
    %126 = vector.shape_cast %124 : vector<1x256xi1> to vector<1x256xi1>
    %127 = vector.broadcast %126 : vector<1x256xi1> to vector<32x256xi1>
    %128 = arith.select %127, %122, %125 : vector<32x256xi1>, vector<32x256xbf16>
    %c192_92 = arith.constant 192 : index
    %c0_93 = arith.constant 0 : index
    %129 = vector.load %arg14[%c192_92, %c0_93] : memref<288x256xbf16, #tpu.memory_space<vmem>>, vector<32x256xbf16>
    tpu.vector_store %arg14[%c192_92, %c0_93], %128 {strides = array<i32>} : memref<288x256xbf16, #tpu.memory_space<vmem>>, vector<32x256xbf16>,
    %c0_94 = arith.constant 0 : index
    %c33_95 = arith.constant 33 : index
    %130 = vector.load %arg15[%c0_94, %c33_95] : memref<32x290xbf16, #tpu.memory_space<vmem>>, vector<32x256xbf16>
    %c224_96 = arith.constant 224 : index
    %c0_97 = arith.constant 0 : index
    %131 = vector.load %arg14[%c224_96, %c0_97] : memref<288x256xbf16, #tpu.memory_space<vmem>>, vector<32x256xbf16>
    tpu.vector_store %arg14[%c224_96, %c0_97], %130 {strides = array<i32>} : memref<288x256xbf16, #tpu.memory_space<vmem>>, vector<32x256xbf16>,
    %c0_98 = arith.constant 0 : index
    %c34_99 = arith.constant 34 : index
    %132 = vector.load %arg15[%c0_98, %c34_99] : memref<32x290xbf16, #tpu.memory_space<vmem>>, vector<32x256xbf16>
    %c15_i32_100 = arith.constant 15 : i32
    %133 = vector.broadcast %c15_i32_100 : i32 to vector<1x256xi32>
    %134 = arith.cmpi slt, %4, %133 : vector<1x256xi32>
    %cst_101 = arith.constant 0.000000e+00 : bf16
    %135 = vector.broadcast %cst_101 : bf16 to vector<32x256xbf16>
    %136 = vector.shape_cast %134 : vector<1x256xi1> to vector<1x256xi1>
    %137 = vector.broadcast %136 : vector<1x256xi1> to vector<32x256xi1>
    %138 = arith.select %137, %132, %135 : vector<32x256xi1>, vector<32x256xbf16>
    %c256_102 = arith.constant 256 : index
    %c0_103 = arith.constant 0 : index
    %139 = vector.load %arg14[%c256_102, %c0_103] : memref<288x256xbf16, #tpu.memory_space<vmem>>, vector<32x256xbf16>
    tpu.vector_store %arg14[%c256_102, %c0_103], %138 {strides = array<i32>} : memref<288x256xbf16, #tpu.memory_space<vmem>>, vector<32x256xbf16>,
    %c0_104 = arith.constant 0 : index
    %c0_105 = arith.constant 0 : index
    %140 = vector.load %arg6[%c0_104, %c0_105] : memref<32x288xbf16, #tpu.memory_space<vmem>>, vector<32x288xbf16>
    %c0_106 = arith.constant 0 : index
    %c0_107 = arith.constant 0 : index
    %141 = vector.load %arg14[%c0_106, %c0_107] : memref<288x256xbf16, #tpu.memory_space<vmem>>, vector<288x256xbf16>
    %cst_108 = arith.constant dense<0.000000e+00> : vector<32x256xf32>
    %142 = tpu.matmul %140, %141, %cst_108 {dimension_numbers = #tpu.dot_dimension_numbers<[1], [0], [0], [1], [0, 0, 1, 1], [], []>} : vector<32x288xbf16>, vector<288x256xbf16>, vector<32x256xf32> -> vector<32x256xf32>
    %c0_109 = arith.constant 0 : index
    %c0_110 = arith.constant 0 : index
    %143 = vector.load %arg7[%c0_109, %c0_110] : memref<32x1xf32, #tpu.memory_space<vmem>>, vector<32x1xf32>
    %144 = vector.broadcast %143 : vector<32x1xf32> to vector<32x256xf32>
    %145 = arith.addf %142, %144 : vector<32x256xf32>
    %c0_111 = arith.constant 0 : index
    %c0_112 = arith.constant 0 : index
    %146 = vector.load %arg8[%c0_111, %c0_112] : memref<32x2xf32, #tpu.memory_space<vmem>>, vector<32x2xf32>
    %c0_113 = arith.constant 0 : index
    %c0_114 = arith.constant 0 : index
    %147 = vector.load %arg9[%c0_113, %c0_114] : memref<1x2xf32, #tpu.memory_space<vmem>>, vector<1x2xf32>
    %c0_115 = arith.constant 0 : index
    %c0_116 = arith.constant 0 : index
    %148 = vector.load %arg10[%c0_115, %c0_116] : memref<32x2xf32, #tpu.memory_space<vmem>>, vector<32x2xf32>
    %c0_117 = arith.constant 0 : index
    %c0_118 = arith.constant 0 : index
    %149 = vector.load %arg11[%c0_117, %c0_118] : memref<32x1xf32, #tpu.memory_space<vmem>>, vector<32x1xf32>
    %cst_119 = arith.constant dense<0.000000e+00> : vector<32xf32>
    %150 = vector.multi_reduction <add>, %145, %cst_119 [1] : vector<32x256xf32> to vector<32xf32>
    %151 = vector.shape_cast %150 : vector<32xf32> to vector<32x1xf32>
    %cst_120 = arith.constant 2.560000e+02 : f32
    %152 = vector.broadcast %cst_120 : f32 to vector<32x1xf32>
    %153 = arith.divf %151, %152 : vector<32x1xf32>
    %154 = vector.broadcast %153 : vector<32x1xf32> to vector<32x2xf32>
    %155 = arith.mulf %154, %146 : vector<32x2xf32>
    %cst_121 = arith.constant dense<0.000000e+00> : vector<2xf32>
    %156 = vector.multi_reduction <add>, %155, %cst_121 [0] : vector<32x2xf32> to vector<2xf32>
    %157 = vector.shape_cast %156 : vector<2xf32> to vector<1x2xf32>
    %158 = arith.addf %157, %147 : vector<1x2xf32>
    %cst_122 = arith.constant 0.000000e+00 : f32
    %159 = vector.broadcast %cst_122 : f32 to vector<1x2xf32>
    %160 = arith.cmpf oge, %158, %159 : vector<1x2xf32>
    %161 = vector.broadcast %1 : f32 to vector<1x2xf32>
    %162 = arith.mulf %161, %158 : vector<1x2xf32>
    %163 = arith.select %160, %158, %162 : vector<1x2xi1>, vector<1x2xf32>
    %164 = vector.broadcast %163 : vector<1x2xf32> to vector<32x2xf32>
    %165 = arith.mulf %164, %148 : vector<32x2xf32>
    %cst_123 = arith.constant dense<0.000000e+00> : vector<32xf32>
    %166 = vector.multi_reduction <add>, %165, %cst_123 [1] : vector<32x2xf32> to vector<32xf32>
    %167 = vector.shape_cast %166 : vector<32xf32> to vector<32x1xf32>
    %168 = arith.addf %167, %149 : vector<32x1xf32>
    %169 = arith.negf %168 : vector<32x1xf32>
    %170 = math.exp %169 : vector<32x1xf32>
    %cst_124 = arith.constant 1.000000e+00 : f32
    %171 = vector.broadcast %cst_124 : f32 to vector<32x1xf32>
    %172 = arith.addf %171, %170 : vector<32x1xf32>
    %173 = arith.divf %171, %172 : vector<32x1xf32>
    %174 = vector.broadcast %173 : vector<32x1xf32> to vector<32x256xf32>
    %175 = arith.mulf %145, %174 : vector<32x256xf32>
    %c0_125 = arith.constant 0 : index
    %c0_126 = arith.constant 0 : index
    %c0_127 = arith.constant 0 : index
    %176 = vector.load %arg1[%c0_125, %c0_126, %c0_127] : memref<1x32x256xf32, #tpu.memory_space<vmem>>, vector<1x32x256xf32>
    %177 = vector.shape_cast %176 : vector<1x32x256xf32> to vector<32x256xf32>
    %178 = arith.addf %175, %177 : vector<32x256xf32>
    %cst_128 = arith.constant 0.000000e+00 : f32
    %179 = vector.broadcast %cst_128 : f32 to vector<32x256xf32>
    %180 = arith.cmpf oge, %178, %179 : vector<32x256xf32>
    %181 = vector.broadcast %0 : f32 to vector<32x256xf32>
    %182 = arith.mulf %181, %178 : vector<32x256xf32>
    %183 = arith.select %180, %178, %182 : vector<32x256xi1>, vector<32x256xf32>
    %c0_129 = arith.constant 0 : index
    %c0_130 = arith.constant 0 : index
    %c0_131 = arith.constant 0 : index
    %184 = vector.load %arg13[%c0_129, %c0_130, %c0_131] : memref<1x32x256xf32, #tpu.memory_space<vmem>>, vector<1x32x256xf32>
    %185 = vector.shape_cast %184 : vector<1x32x256xf32> to vector<32x256xf32>
    %186 = vector.shape_cast %183 : vector<32x256xf32> to vector<1x32x256xf32>
    tpu.vector_store %arg13[%c0_129, %c0_130, %c0_131], %186 {strides = array<i32>} : memref<1x32x256xf32, #tpu.memory_space<vmem>>, vector<1x32x256xf32>,
    return
  }
  func.func @transform_0(%arg0: i32) -> (i32, i32, i32) {
    %c0_i32 = arith.constant 0 : i32
    %c0_i32_0 = arith.constant 0 : i32
    %c0_i32_1 = arith.constant 0 : i32
    return %arg0, %c0_i32, %c0_i32_0 : i32, i32, i32
  }
  func.func @transform_1(%arg0: i32) -> (i32, i32) {
    %c0_i32 = arith.constant 0 : i32
    %c0_i32_0 = arith.constant 0 : i32
    %c0_i32_1 = arith.constant 0 : i32
    return %c0_i32, %c0_i32_0 : i32, i32
  }
  func.func @transform_2(%arg0: i32) -> (i32, i32) {
    %c0_i32 = arith.constant 0 : i32
    %c0_i32_0 = arith.constant 0 : i32
    %c0_i32_1 = arith.constant 0 : i32
    return %c0_i32, %c0_i32_0 : i32, i32
  }
  func.func @transform_3(%arg0: i32) -> (i32, i32) {
    %c0_i32 = arith.constant 0 : i32
    %c0_i32_0 = arith.constant 0 : i32
    %c0_i32_1 = arith.constant 0 : i32
    return %c0_i32, %c0_i32_0 : i32, i32
  }
  func.func @transform_4(%arg0: i32) -> (i32, i32) {
    %c0_i32 = arith.constant 0 : i32
    %c0_i32_0 = arith.constant 0 : i32
    %c0_i32_1 = arith.constant 0 : i32
    return %c0_i32, %c0_i32_0 : i32, i32
  }
  func.func @transform_5(%arg0: i32) -> (i32, i32) {
    %c0_i32 = arith.constant 0 : i32
    %c0_i32_0 = arith.constant 0 : i32
    %c0_i32_1 = arith.constant 0 : i32
    return %c0_i32, %c0_i32_0 : i32, i32
  }
  func.func @transform_6(%arg0: i32) -> (i32, i32) {
    %c0_i32 = arith.constant 0 : i32
    %c0_i32_0 = arith.constant 0 : i32
    %c0_i32_1 = arith.constant 0 : i32
    return %c0_i32, %c0_i32_0 : i32, i32
  }
  func.func @transform_7(%arg0: i32) -> (i32, i32) {
    %c0_i32 = arith.constant 0 : i32
    %c0_i32_0 = arith.constant 0 : i32
    %c0_i32_1 = arith.constant 0 : i32
    return %c0_i32, %c0_i32_0 : i32, i32
  }
  func.func @transform_8(%arg0: i32) -> (i32, i32) {
    %c0_i32 = arith.constant 0 : i32
    %c0_i32_0 = arith.constant 0 : i32
    %c0_i32_1 = arith.constant 0 : i32
    return %c0_i32, %c0_i32_0 : i32, i32
  }
  func.func @transform_9(%arg0: i32) -> (i32, i32) {
    %c0_i32 = arith.constant 0 : i32
    %c0_i32_0 = arith.constant 0 : i32
    %c0_i32_1 = arith.constant 0 : i32
    return %c0_i32, %c0_i32_0 : i32, i32
  }
  func.func @transform_10(%arg0: i32) -> (i32, i32) {
    %c0_i32 = arith.constant 0 : i32
    %c0_i32_0 = arith.constant 0 : i32
    %c0_i32_1 = arith.constant 0 : i32
    return %c0_i32, %c0_i32_0 : i32, i32
  }
  func.func @transform_11(%arg0: i32) -> i32 {
    %c0_i32 = arith.constant 0 : i32
    %c0_i32_0 = arith.constant 0 : i32
    return %c0_i32 : i32
  }
  func.func @transform_12(%arg0: i32) -> (i32, i32, i32) {
    %c0_i32 = arith.constant 0 : i32
    %c0_i32_0 = arith.constant 0 : i32
    %c0_i32_1 = arith.constant 0 : i32
    return %arg0, %c0_i32, %c0_i32_0 : i32, i32, i32
  }
}

</mosaic_0001>

<llo_original>
// kernel: tpu_custom_call.1
$region0: #{tpu_custom_call.1}
  #allocation0 [shape = 'u32[]', space=smem, size = 0x4, offset = 0x4, fixed_abs, tag = 'smem constant byte address 0x4 - core index']
  #allocation1 [shape = 'u32[144,128]{1,0:T(1,128)}', space=vmem, size = 0x12000, scoped, tag = 'internal scratch']
  #allocation2 [shape = 'bf16[288,256]{1,0:T(8,128)(2,1)}', space=vmem, size = 0x24000, scoped, tag = 'scratch operand']
  #allocation3 [shape = 'bf16[32,290]{1,0:T(8,128)(2,1)}', space=vmem, size = 0x6000, scoped, tag = 'scratch operand']
  %s0 = inlined_call_operand.vmem [shape: f32[2,32,256], index: 0, kind: input, shape index: {}]
  %s1 = inlined_call_operand.vmem [shape: f32[32,1], index: 1, kind: input, shape index: {}]
  %s2 = inlined_call_operand.vmem [shape: f32[32,1], index: 2, kind: input, shape index: {}]
  %s3 = inlined_call_operand.vmem [shape: bf16[32,288], index: 3, kind: input, shape index: {}]
  %s4 = inlined_call_operand.vmem [shape: f32[32,1], index: 4, kind: input, shape index: {}]
  %s5 = inlined_call_operand.vmem [shape: bf16[32,288], index: 5, kind: input, shape index: {}]
  %s6 = inlined_call_operand.vmem [shape: f32[32,1], index: 6, kind: input, shape index: {}]
  %s7 = inlined_call_operand.vmem [shape: f32[32,2], index: 7, kind: input, shape index: {}]
  %s8 = inlined_call_operand.vmem [shape: f32[1,2], index: 8, kind: input, shape index: {}]
  %s9 = inlined_call_operand.vmem [shape: f32[32,2], index: 9, kind: input, shape index: {}]
  %s10 = inlined_call_operand.vmem [shape: f32[32,1], index: 10, kind: input, shape index: {}]
  %s11 = inlined_call_operand.vmem [shape: f32[2], index: 11, kind: input, shape index: {}]
  %s12 = inlined_call_operand.hbm [shape: f32[2,32,256], index: 12, kind: output, shape index: {}]
  %s13 = sld [smem:[#allocation0]]
  $region85: #{tpu_custom_call.1} parent=0
    _
  %s15 = ssub.s32 1, %s13
  %s16 = scalar_select 0, %s15, %s13
  $region1: #{tpu_custom_call.1} parent=0
    #allocation4 [shape = 'u8[512]{0}', space=smem, size = 0x200, scoped, tag = 'input window, operand 11, single buffered']
    #allocation5 [shape = 's32[2]{0}', space=sflag, size = 0x8, scoped, tag = 'scoped memory for tpu_custom_call.1']
    #allocation6 [shape = 's32[2]{0}', space=sflag, size = 0x8, scoped, tag = 'scoped memory for tpu_custom_call.1']
    #allocation7 [shape = 'u8[65536]{0}', space=vmem, size = 0x10000, scoped, tag = 'output window, operand 0']
    %17 = vsyncpa [#allocation6], 0
    %18 = vsyncpa [#allocation5], 0
    %s19 = scalar_lea.sflag [#allocation5], 1
    %20 = vsyncpa %s19, 0
    loop: start=0, step=1, limit=4
    $region2: #{tpu_custom_call.1} parent=1 // loop_pre_header
      _
    $region3: #{tpu_custom_call.1} parent=1 // loop_header
      %s22 = sphi 0, %s26
      %p23 = scmp.ge.s32.totalorder %s22, 4
      %s32 = sphi 0, %s34
      %s35 = sphi 0, %s32
      %s36 = sphi 0, %s35
      %s52 = sphi 0, %s36
      %s56 = sphi 0, %s56
      %s58 = sphi 0, %s56
      %s59 = sphi 0, %s58
      %s73 = sphi 0, %s59
      %s77 = sphi 0, %s77
      %s79 = sphi 0, %s77
      %s80 = sphi 0, %s79
      %s94 = sphi 0, %s80
      %s98 = sphi 0, %s98
      %s100 = sphi 0, %s98
      %s101 = sphi 0, %s100
      %s115 = sphi 0, %s101
      %s119 = sphi 0, %s119
      %s121 = sphi 0, %s119
      %s122 = sphi 0, %s121
      %s136 = sphi 0, %s122
      %s140 = sphi 0, %s140
      %s142 = sphi 0, %s140
      %s143 = sphi 0, %s142
      %s157 = sphi 0, %s143
      %s161 = sphi 0, %s161
      %s163 = sphi 0, %s161
      %s164 = sphi 0, %s163
      %s178 = sphi 0, %s164
      %s182 = sphi 0, %s182
      %s184 = sphi 0, %s182
      %s185 = sphi 0, %s184
      %s199 = sphi 0, %s185
      %s203 = sphi 0, %s203
      %s205 = sphi 0, %s203
      %s206 = sphi 0, %s205
      %s220 = sphi 0, %s206
      %s224 = sphi 0, %s224
      %s226 = sphi 0, %s224
      %s227 = sphi 0, %s226
      %s241 = sphi 0, %s227
      %s245 = sphi 0, %s245
      %s247 = sphi 0, %s245
      %s248 = sphi 0, %s247
      %s262 = sphi 0, %s248
      %s266 = sphi 0, %s266
      %s268 = sphi 0, %s266
      %s269 = sphi 0, %s268
      %s283 = sphi 0, %s269
      %s289 = sphi 0, %s291
      %s292 = sphi 0, %s289
      %s293 = sphi 0, %s292
      %s309 = sphi 0, %s293
    $region4: #{tpu_custom_call.1} parent=1 // loop_header_branch
      %25 = sbr.rel (%p23) target = $region8
    $region5: #{tpu_custom_call.1} parent=1 // loop_body
      %s27 = ssub.s32 %s22, 1
      %s28 = ssub.s32 %s22, 2
      %s29 = sadd.s32 %s22, 1
      %s30 = ssub.s32 %s22, %s29
      %p31 = scmp.eq.s32.totalorder %s30, 0
      %s33 = sadd.s32 %s32, 1
      %s34 = scalar_select %p31, %s32, %s33
      %p37 = pneg %p31
      %p38 = scmp.eq.s32.totalorder %s22, 1
      %p39 = por %p37, %p38
      %p40 = scmp.ne.s32.totalorder %s32, %s35
      %p41 = scmp.eq.s32.totalorder %s22, 0
      %p42 = por %p40, %p41
      %p43 = scmp.ne.s32.totalorder %s32, %s35
      %p44 = scmp.eq.s32.totalorder %s27, 1
      %p45 = por %p43, %p44
      %p46 = scmp.ne.s32.totalorder %s35, %s36
      %p47 = scmp.eq.s32.totalorder %s27, 0
      %p48 = por %p46, %p47
      %p49 = scmp.ne.s32.totalorder %s35, %s36
      %p50 = scmp.eq.s32.totalorder %s28, 1
      %p51 = por %p49, %p50
      %p53 = scmp.ne.s32.totalorder %s36, %s52
      %p54 = scmp.eq.s32.totalorder %s28, 0
      %p55 = por %p53, %p54
      %s57 = sadd.s32 %s56, 1
      %p60 = scmp.eq.s32.totalorder %s22, 1
      %p61 = scmp.ne.s32.totalorder %s56, %s58
      %p62 = scmp.eq.s32.totalorder %s22, 0
      %p63 = por %p61, %p62
      %p64 = scmp.ne.s32.totalorder %s56, %s58
      %p65 = scmp.eq.s32.totalorder %s27, 1
      %p66 = por %p64, %p65
      %p67 = scmp.ne.s32.totalorder %s58, %s59
      %p68 = scmp.eq.s32.totalorder %s27, 0
      %p69 = por %p67, %p68
      %p70 = scmp.ne.s32.totalorder %s58, %s59
      %p71 = scmp.eq.s32.totalorder %s28, 1
      %p72 = por %p70, %p71
      %p74 = scmp.ne.s32.totalorder %s59, %s73
      %p75 = scmp.eq.s32.totalorder %s28, 0
      %p76 = por %p74, %p75
      %s78 = sadd.s32 %s77, 1
      %p81 = scmp.eq.s32.totalorder %s22, 1
      %p82 = scmp.ne.s32.totalorder %s77, %s79
      %p83 = scmp.eq.s32.totalorder %s22, 0
      %p84 = por %p82, %p83
      %p85 = scmp.ne.s32.totalorder %s77, %s79
      %p86 = scmp.eq.s32.totalorder %s27, 1
      %p87 = por %p85, %p86
      %p88 = scmp.ne.s32.totalorder %s79, %s80
      %p89 = scmp.eq.s32.totalorder %s27, 0
      %p90 = por %p88, %p89
      %p91 = scmp.ne.s32.totalorder %s79, %s80
      %p92 = scmp.eq.s32.totalorder %s28, 1
      %p93 = por %p91, %p92
      %p95 = scmp.ne.s32.totalorder %s80, %s94
      %p96 = scmp.eq.s32.totalorder %s28, 0
      %p97 = por %p95, %p96
      %s99 = sadd.s32 %s98, 1
      %p102 = scmp.eq.s32.totalorder %s22, 1
      %p103 = scmp.ne.s32.totalorder %s98, %s100
      %p104 = scmp.eq.s32.totalorder %s22, 0
      %p105 = por %p103, %p104
      %p106 = scmp.ne.s32.totalorder %s98, %s100
      %p107 = scmp.eq.s32.totalorder %s27, 1
      %p108 = por %p106, %p107
      %p109 = scmp.ne.s32.totalorder %s100, %s101
      %p110 = scmp.eq.s32.totalorder %s27, 0
      %p111 = por %p109, %p110
      %p112 = scmp.ne.s32.totalorder %s100, %s101
      %p113 = scmp.eq.s32.totalorder %s28, 1
      %p114 = por %p112, %p113
      %p116 = scmp.ne.s32.totalorder %s101, %s115
      %p117 = scmp.eq.s32.totalorder %s28, 0
      %p118 = por %p116, %p117
      %s120 = sadd.s32 %s119, 1
      %p123 = scmp.eq.s32.totalorder %s22, 1
      %p124 = scmp.ne.s32.totalorder %s119, %s121
      %p125 = scmp.eq.s32.totalorder %s22, 0
      %p126 = por %p124, %p125
      %p127 = scmp.ne.s32.totalorder %s119, %s121
      %p128 = scmp.eq.s32.totalorder %s27, 1
      %p129 = por %p127, %p128
      %p130 = scmp.ne.s32.totalorder %s121, %s122
      %p131 = scmp.eq.s32.totalorder %s27, 0
      %p132 = por %p130, %p131
      %p133 = scmp.ne.s32.totalorder %s121, %s122
      %p134 = scmp.eq.s32.totalorder %s28, 1
      %p135 = por %p133, %p134
      %p137 = scmp.ne.s32.totalorder %s122, %s136
      %p138 = scmp.eq.s32.totalorder %s28, 0
      %p139 = por %p137, %p138
      %s141 = sadd.s32 %s140, 1
      %p144 = scmp.eq.s32.totalorder %s22, 1
      %p145 = scmp.ne.s32.totalorder %s140, %s142
      %p146 = scmp.eq.s32.totalorder %s22, 0
      %p147 = por %p145, %p146
      %p148 = scmp.ne.s32.totalorder %s140, %s142
      %p149 = scmp.eq.s32.totalorder %s27, 1
      %p150 = por %p148, %p149
      %p151 = scmp.ne.s32.totalorder %s142, %s143
      %p152 = scmp.eq.s32.totalorder %s27, 0
      %p153 = por %p151, %p152
      %p154 = scmp.ne.s32.totalorder %s142, %s143
      %p155 = scmp.eq.s32.totalorder %s28, 1
      %p156 = por %p154, %p155
      %p158 = scmp.ne.s32.totalorder %s143, %s157
      %p159 = scmp.eq.s32.totalorder %s28, 0
      %p160 = por %p158, %p159
      %s162 = sadd.s32 %s161, 1
      %p165 = scmp.eq.s32.totalorder %s22, 1
      %p166 = scmp.ne.s32.totalorder %s161, %s163
      %p167 = scmp.eq.s32.totalorder %s22, 0
      %p168 = por %p166, %p167
      %p169 = scmp.ne.s32.totalorder %s161, %s163
      %p170 = scmp.eq.s32.totalorder %s27, 1
      %p171 = por %p169, %p170
      %p172 = scmp.ne.s32.totalorder %s163, %s164
      %p173 = scmp.eq.s32.totalorder %s27, 0
      %p174 = por %p172, %p173
      %p175 = scmp.ne.s32.totalorder %s163, %s164
      %p176 = scmp.eq.s32.totalorder %s28, 1
      %p177 = por %p175, %p176
      %p179 = scmp.ne.s32.totalorder %s164, %s178
      %p180 = scmp.eq.s32.totalorder %s28, 0
      %p181 = por %p179, %p180
      %s183 = sadd.s32 %s182, 1
      %p186 = scmp.eq.s32.totalorder %s22, 1
      %p187 = scmp.ne.s32.totalorder %s182, %s184
      %p188 = scmp.eq.s32.totalorder %s22, 0
      %p189 = por %p187, %p188
      %p190 = scmp.ne.s32.totalorder %s182, %s184
      %p191 = scmp.eq.s32.totalorder %s27, 1
      %p192 = por %p190, %p191
      %p193 = scmp.ne.s32.totalorder %s184, %s185
      %p194 = scmp.eq.s32.totalorder %s27, 0
      %p195 = por %p193, %p194
      %p196 = scmp.ne.s32.totalorder %s184, %s185
      %p197 = scmp.eq.s32.totalorder %s28, 1
      %p198 = por %p196, %p197
      %p200 = scmp.ne.s32.totalorder %s185, %s199
      %p201 = scmp.eq.s32.totalorder %s28, 0
      %p202 = por %p200, %p201
      %s204 = sadd.s32 %s203, 1
      %p207 = scmp.eq.s32.totalorder %s22, 1
      %p208 = scmp.ne.s32.totalorder %s203, %s205
      %p209 = scmp.eq.s32.totalorder %s22, 0
      %p210 = por %p208, %p209
      %p211 = scmp.ne.s32.totalorder %s203, %s205
      %p212 = scmp.eq.s32.totalorder %s27, 1
      %p213 = por %p211, %p212
      %p214 = scmp.ne.s32.totalorder %s205, %s206
      %p215 = scmp.eq.s32.totalorder %s27, 0
      %p216 = por %p214, %p215
      %p217 = scmp.ne.s32.totalorder %s205, %s206
      %p218 = scmp.eq.s32.totalorder %s28, 1
      %p219 = por %p217, %p218
      %p221 = scmp.ne.s32.totalorder %s206, %s220
      %p222 = scmp.eq.s32.totalorder %s28, 0
      %p223 = por %p221, %p222
      %s225 = sadd.s32 %s224, 1
      %p228 = scmp.eq.s32.totalorder %s22, 1
      %p229 = scmp.ne.s32.totalorder %s224, %s226
      %p230 = scmp.eq.s32.totalorder %s22, 0
      %p231 = por %p229, %p230
      %p232 = scmp.ne.s32.totalorder %s224, %s226
      %p233 = scmp.eq.s32.totalorder %s27, 1
      %p234 = por %p232, %p233
      %p235 = scmp.ne.s32.totalorder %s226, %s227
      %p236 = scmp.eq.s32.totalorder %s27, 0
      %p237 = por %p235, %p236
      %p238 = scmp.ne.s32.totalorder %s226, %s227
      %p239 = scmp.eq.s32.totalorder %s28, 1
      %p240 = por %p238, %p239
      %p242 = scmp.ne.s32.totalorder %s227, %s241
      %p243 = scmp.eq.s32.totalorder %s28, 0
      %p244 = por %p242, %p243
      %s246 = sadd.s32 %s245, 1
      %p249 = scmp.eq.s32.totalorder %s22, 1
      %p250 = scmp.ne.s32.totalorder %s245, %s247
      %p251 = scmp.eq.s32.totalorder %s22, 0
      %p252 = por %p250, %p251
      %p253 = scmp.ne.s32.totalorder %s245, %s247
      %p254 = scmp.eq.s32.totalorder %s27, 1
      %p255 = por %p253, %p254
      %p256 = scmp.ne.s32.totalorder %s247, %s248
      %p257 = scmp.eq.s32.totalorder %s27, 0
      %p258 = por %p256, %p257
      %p259 = scmp.ne.s32.totalorder %s247, %s248
      %p260 = scmp.eq.s32.totalorder %s28, 1
      %p261 = por %p259, %p260
      %p263 = scmp.ne.s32.totalorder %s248, %s262
      %p264 = scmp.eq.s32.totalorder %s28, 0
      %p265 = por %p263, %p264
      %s267 = sadd.s32 %s266, 1
      %p270 = scmp.eq.s32.totalorder %s22, 1
      %p271 = scmp.ne.s32.totalorder %s266, %s268
      %p272 = scmp.eq.s32.totalorder %s22, 0
      %p273 = por %p271, %p272
      %p274 = scmp.ne.s32.totalorder %s266, %s268
      %p275 = scmp.eq.s32.totalorder %s27, 1
      %p276 = por %p274, %p275
      %p277 = scmp.ne.s32.totalorder %s268, %s269
      %p278 = scmp.eq.s32.totalorder %s27, 0
      %p279 = por %p277, %p278
      %p280 = scmp.ne.s32.totalorder %s268, %s269
      %p281 = scmp.eq.s32.totalorder %s28, 1
      %p282 = por %p280, %p281
      %p284 = scmp.ne.s32.totalorder %s269, %s283
      %p285 = scmp.eq.s32.totalorder %s28, 0
      %p286 = por %p284, %p285
      %s287 = ssub.s32 %s22, %s29
      %p288 = scmp.eq.s32.totalorder %s287, 0
      %s290 = sadd.s32 %s289, 1
      %s291 = scalar_select %p288, %s289, %s290
      %p294 = pneg %p288
      %p295 = scmp.eq.s32.totalorder %s22, 1
      %p296 = por %p294, %p295
      %p297 = scmp.ne.s32.totalorder %s289, %s292
      %p298 = scmp.eq.s32.totalorder %s22, 0
      %p299 = por %p297, %p298
      %p300 = scmp.ne.s32.totalorder %s289, %s292
      %p301 = scmp.eq.s32.totalorder %s27, 1
      %p302 = por %p300, %p301
      %p303 = scmp.ne.s32.totalorder %s292, %s293
      %p304 = scmp.eq.s32.totalorder %s27, 0
      %p305 = por %p303, %p304
      %p306 = scmp.ne.s32.totalorder %s292, %s293
      %p307 = scmp.eq.s32.totalorder %s28, 1
      %p308 = por %p306, %p307
      %p310 = scmp.ne.s32.totalorder %s293, %s309
      %p311 = scmp.eq.s32.totalorder %s28, 0
      %p312 = por %p310, %p311
      %p313 = scmp.le.s32.totalorder 1, %s22
      %p314 = scmp.lt.s32.totalorder %s22, 3
      %p315 = pnand %p313, %p314
      %p316 = pneg %p315
      // Predicated region
      $region9: #{tpu_custom_call.1} parent=5 // pred_check
        _
      $region10: #{tpu_custom_call.1} parent=5 // pred_check_branch
        %318 = sbr.rel (%p315) target = $region12
      $region11: #{tpu_custom_call.1} parent=5 // pred_region
        %s319 = ssub.s32 %s22, 1
        // Predicated region
        $region13: #{tpu_custom_call.1} parent=11 // pred_check
          %p320 = pneg %p69
        $region14: #{tpu_custom_call.1} parent=11 // pred_check_branch
          %322 = sbr.rel (%p320) target = $region16
        $region15: #{tpu_custom_call.1} parent=11 // pred_region
          _
        $region16: #{tpu_custom_call.1} parent=11 // pred_fallthru
          _
        // Predicated region
        $region17: #{tpu_custom_call.1} parent=11 // pred_check
          %p323 = pneg %p90
        $region18: #{tpu_custom_call.1} parent=11 // pred_check_branch
          %325 = sbr.rel (%p323) target = $region20
        $region19: #{tpu_custom_call.1} parent=11 // pred_region
          _
        $region20: #{tpu_custom_call.1} parent=11 // pred_fallthru
          _
        // Predicated region
        $region21: #{tpu_custom_call.1} parent=11 // pred_check
          %p326 = pneg %p111
        $region22: #{tpu_custom_call.1} parent=11 // pred_check_branch
          %328 = sbr.rel (%p326) target = $region24
        $region23: #{tpu_custom_call.1} parent=11 // pred_region
          _
        $region24: #{tpu_custom_call.1} parent=11 // pred_fallthru
          _
        // Predicated region
        $region25: #{tpu_custom_call.1} parent=11 // pred_check
          %p329 = pneg %p132
        $region26: #{tpu_custom_call.1} parent=11 // pred_check_branch
          %331 = sbr.rel (%p329) target = $region28
        $region27: #{tpu_custom_call.1} parent=11 // pred_region
          _
        $region28: #{tpu_custom_call.1} parent=11 // pred_fallthru
          _
        // Predicated region
        $region29: #{tpu_custom_call.1} parent=11 // pred_check
          %p332 = pneg %p153
        $region30: #{tpu_custom_call.1} parent=11 // pred_check_branch
          %334 = sbr.rel (%p332) target = $region32
        $region31: #{tpu_custom_call.1} parent=11 // pred_region
          _
        $region32: #{tpu_custom_call.1} parent=11 // pred_fallthru
          _
        // Predicated region
        $region33: #{tpu_custom_call.1} parent=11 // pred_check
          %p335 = pneg %p174
        $region34: #{tpu_custom_call.1} parent=11 // pred_check_branch
          %337 = sbr.rel (%p335) target = $region36
        $region35: #{tpu_custom_call.1} parent=11 // pred_region
          _
        $region36: #{tpu_custom_call.1} parent=11 // pred_fallthru
          _
        // Predicated region
        $region37: #{tpu_custom_call.1} parent=11 // pred_check
          %p338 = pneg %p195
        $region38: #{tpu_custom_call.1} parent=11 // pred_check_branch
          %340 = sbr.rel (%p338) target = $region40
        $region39: #{tpu_custom_call.1} parent=11 // pred_region
          _
        $region40: #{tpu_custom_call.1} parent=11 // pred_fallthru
          _
        // Predicated region
        $region41: #{tpu_custom_call.1} parent=11 // pred_check
          %p341 = pneg %p216
        $region42: #{tpu_custom_call.1} parent=11 // pred_check_branch
          %343 = sbr.rel (%p341) target = $region44
        $region43: #{tpu_custom_call.1} parent=11 // pred_region
          _
        $region44: #{tpu_custom_call.1} parent=11 // pred_fallthru
          _
        // Predicated region
        $region45: #{tpu_custom_call.1} parent=11 // pred_check
          %p344 = pneg %p237
        $region46: #{tpu_custom_call.1} parent=11 // pred_check_branch
          %346 = sbr.rel (%p344) target = $region48
        $region47: #{tpu_custom_call.1} parent=11 // pred_region
          _
        $region48: #{tpu_custom_call.1} parent=11 // pred_fallthru
          _
        // Predicated region
        $region49: #{tpu_custom_call.1} parent=11 // pred_check
          %p347 = pneg %p258
        $region50: #{tpu_custom_call.1} parent=11 // pred_check_branch
          %349 = sbr.rel (%p347) target = $region52
        $region51: #{tpu_custom_call.1} parent=11 // pred_region
          _
        $region52: #{tpu_custom_call.1} parent=11 // pred_fallthru
          _
        // Predicated region
        $region53: #{tpu_custom_call.1} parent=11 // pred_check
          %p350 = pneg %p279
        $region54: #{tpu_custom_call.1} parent=11 // pred_check_branch
          %352 = sbr.rel (%p350) target = $region56
        $region55: #{tpu_custom_call.1} parent=11 // pred_region
          %s354 = ssub.s32 16, 16
          %355 = vsyncadd [#allocation6], %s354
          %s357 = sshll.u32 %s11, 4
          %s358 = int_to_ptr.vmem [resolvable:$true] %s357
          %360 = dma.vmem_to_smem %s358, 16, [#allocation4], [#allocation6]
        $region56: #{tpu_custom_call.1} parent=11 // pred_fallthru
          _
      $region12: #{tpu_custom_call.1} parent=5 // pred_fallthru
        _
      %p361 = scmp.lt.s32.totalorder %s22, 2
      // Predicated region
      $region57: #{tpu_custom_call.1} parent=5 // pred_check
        %p362 = pneg %p361
      $region58: #{tpu_custom_call.1} parent=5 // pred_check_branch
        %364 = sbr.rel (%p362) target = $region60
      $region59: #{tpu_custom_call.1} parent=5 // pred_region
        // Predicated region
        $region61: #{tpu_custom_call.1} parent=59 // pred_check
          %p365 = pneg %p42
        $region62: #{tpu_custom_call.1} parent=59 // pred_check_branch
          %367 = sbr.rel (%p365) target = $region64
        $region63: #{tpu_custom_call.1} parent=59 // pred_region
          %p368 = scmp.lt.s32.totalorder %s22, 1
          %s369 = scalar_select %p368, %s22, 1
          %s370 = smul.addr %s369, 8
          %s371 = smul.addr %s370, 8
          %s372 = scalar_lea.vmem %s0, %s371
        $region64: #{tpu_custom_call.1} parent=59 // pred_fallthru
          _
      $region60: #{tpu_custom_call.1} parent=5 // pred_fallthru
        _
      %p373 = scmp.le.s32.totalorder 1, %s22
      %p374 = scmp.lt.s32.totalorder %s22, 3
      %p375 = pnand %p373, %p374
      %p376 = pneg %p375
      // Predicated region
      $region65: #{tpu_custom_call.1} parent=5 // pred_check
        _
      $region66: #{tpu_custom_call.1} parent=5 // pred_check_branch
        %378 = sbr.rel (%p375) target = $region68
      $region67: #{tpu_custom_call.1} parent=5 // pred_region
        %s379 = ssub.s32 %s22, 1
        // Predicated region
        $region69: #{tpu_custom_call.1} parent=67 // pred_check
          %p380 = pneg %p279
        $region70: #{tpu_custom_call.1} parent=67 // pred_check_branch
          %382 = sbr.rel (%p380) target = $region72
        $region71: #{tpu_custom_call.1} parent=67 // pred_region
          %383 = dma.done [#allocation6], 16
        $region72: #{tpu_custom_call.1} parent=67 // pred_fallthru
          _
        %384 = sfence
        %p385 = scmp.lt.s32.totalorder %s27, 1
        %s386 = scalar_select %p385, %s27, 1
        %s387 = smul.addr %s386, 8
        %s388 = smul.addr %s387, 8
        %s389 = scalar_lea.vmem %s0, %s388
        %p390 = pneg %p48
        %p391 = pneg %p45
        %p392 = pneg %p69
        %p393 = pneg %p66
        %p394 = pneg %p90
        %p395 = pneg %p87
        %p396 = pneg %p111
        %p397 = pneg %p108
        %p398 = pneg %p132
        %p399 = pneg %p129
        %p400 = pneg %p153
        %p401 = pneg %p150
        %p402 = pneg %p174
        %p403 = pneg %p171
        %p404 = pneg %p195
        %p405 = pneg %p192
        %p406 = pneg %p216
        %p407 = pneg %p213
        %p408 = pneg %p237
        %p409 = pneg %p234
        %p410 = pneg %p258
        %p411 = pneg %p255
        %p412 = pneg %p279
        %p413 = pneg %p276
        %p414 = pneg %p305
        %p415 = pneg %p302
        %s416 = sand.u32 %s292, 1
        %s417 = scalar_lea.sflag [#allocation5], %s416
        %s418 = sand.u32 %s292, 1
        %s419 = smul.addr %s418, 64
        %s420 = scalar_lea.vmem [#allocation7], %s419
        %p421 = scmp.lt.s32.totalorder %s27, 1
        %s422 = scalar_select %p421, %s27, 1
        %s423 = smul.addr %s422, 8
        %s424 = smul.addr %s423, 8
        %s425 = scalar_lea.vmem %s0, %s424
        %s429 = sld [smem:[#allocation4]]
        %s430 = sld [smem:[#allocation4 + $0x1]]
        %v431 = vlaneseq
        %v432 = vand.u32 %v431, 127
        %v433 = vadd.s32 %v432, 128
        %v434 = vand.u32 %v432, 15
        %v435 = vand.u32 %v433, 15
        %vm436 = vcmask 134144
        %437 = vst.msk [vmem:[#allocation3] sm:$0xf] %vm436, 0
        %438 = vst.msk [vmem:[#allocation3 + $0xc] sm:$0xf] %vm436, 0
        %439 = vst.msk [vmem:[#allocation3 + $0x18] sm:$0xf] %vm436, 0
        %440 = vst.msk [vmem:[#allocation3 + $0x24] sm:$0xf] %vm436, 0
        %vm441 = vcmask 273544
        %442 = vst.msk [vmem:[#allocation3 + $0x8] sm:$0xf] %vm441, 0
        %443 = vst.msk [vmem:[#allocation3 + $0x14] sm:$0xf] %vm441, 0
        %444 = vst.msk [vmem:[#allocation3 + $0x20] sm:$0xf] %vm441, 0
        %445 = vst.msk [vmem:[#allocation3 + $0x2c] sm:$0xf] %vm441, 0
        %v446 = vld [vmem:[%s1] sm:$0xff]
        %v447 = vld [vmem:[%s1 + $0x8] sm:$0xff]
        %v448 = vld [vmem:[%s1 + $0x10] sm:$0xff]
        %v449 = vld [vmem:[%s1 + $0x18] sm:$0xff]
        %v450 = vld [vmem:[%s2] sm:$0xff]
        %v451 = vld [vmem:[%s2 + $0x8] sm:$0xff]
        %v452 = vld [vmem:[%s2 + $0x10] sm:$0xff]
        %v453 = vld [vmem:[%s2 + $0x18] sm:$0xff]
        %v454 = vld [vmem:[%s425] sm:$0xff]
        %v455 = vld [vmem:[%s425 + $0x8] sm:$0xff]
        %v456 = vld [vmem:[%s425 + $0x10] sm:$0xff]
        %v457 = vld [vmem:[%s425 + $0x18] sm:$0xff]
        %v458 = vld [vmem:[%s425 + $0x20] sm:$0xff]
        %v459 = vld [vmem:[%s425 + $0x28] sm:$0xff]
        %v460 = vld [vmem:[%s425 + $0x30] sm:$0xff]
        %v461 = vld [vmem:[%s425 + $0x38] sm:$0xff]
        %463 = vset.pattern.permute.xlu0 0
        %464 = vperm.xlu0 %463, %v446
        %v465 = vpop.permute.xlu0 %464
        %468 = vset.pattern.permute.xlu0 0
        %469 = vperm.xlu0 %468, %v447
        %v470 = vpop.permute.xlu0 %469
        %473 = vset.pattern.permute.xlu0 0
        %474 = vperm.xlu0 %473, %v448
        %v475 = vpop.permute.xlu0 %474
        %478 = vset.pattern.permute.xlu0 0
        %479 = vperm.xlu0 %478, %v449
        %v480 = vpop.permute.xlu0 %479
        %v482 = vmul.f32 %v454, %v465
        %v483 = vmul.f32 %v455, %v465
        %v484 = vmul.f32 %v456, %v470
        %v485 = vmul.f32 %v457, %v470
        %v486 = vmul.f32 %v458, %v475
        %v487 = vmul.f32 %v459, %v475
        %v488 = vmul.f32 %v460, %v480
        %v489 = vmul.f32 %v461, %v480
        %491 = vset.pattern.permute.xlu0 0
        %492 = vperm.xlu0 %491, %v450
        %v493 = vpop.permute.xlu0 %492
        %496 = vset.pattern.permute.xlu0 0
        %497 = vperm.xlu0 %496, %v451
        %v498 = vpop.permute.xlu0 %497
        %501 = vset.pattern.permute.xlu0 0
        %502 = vperm.xlu0 %501, %v452
        %v503 = vpop.permute.xlu0 %502
        %506 = vset.pattern.permute.xlu0 0
        %507 = vperm.xlu0 %506, %v453
        %v508 = vpop.permute.xlu0 %507
        %v510 = vadd.f32 %v482, %v493
        %v511 = vadd.f32 %v483, %v493
        %v512 = vadd.f32 %v484, %v498
        %v513 = vadd.f32 %v485, %v498
        %v514 = vadd.f32 %v486, %v503
        %v515 = vadd.f32 %v487, %v503
        %v516 = vadd.f32 %v488, %v508
        %v517 = vadd.f32 %v489, %v508
        %v518 = vpack.c.bf16 %v512, %v510
        %v519 = vpack.c.bf16 %v513, %v511
        %v520 = vpack.c.bf16 %v516, %v514
        %v521 = vpack.c.bf16 %v517, %v515
        %v526 = vunpack.c.l.b16 %v518
        %v527 = vunpack.c.l.b16 %v519
        %v528 = vunpack.c.h.b16 %v518
        %v529 = vunpack.c.h.b16 %v519
        %v530 = vunpack.c.l.b16 %v520
        %v531 = vunpack.c.l.b16 %v521
        %v532 = vunpack.c.h.b16 %v520
        %v533 = vunpack.c.h.b16 %v521
        %v534 = vpack.c.b16 %v527, %v526
        %v535 = vpack.c.b16 %v529, %v528
        %v536 = vpack.c.b16 %v531, %v530
        %v537 = vpack.c.b16 %v533, %v532
        %538 = vrot.lane.b32.xlu0 %v534, 17
        %v539 = vpop.permute.xlu0 %538
        %540 = vrot.lane.b32.xlu0 %v535, 17
        %v541 = vpop.permute.xlu0 %540
        %542 = vrot.lane.b32.xlu0 %v536, 17
        %v543 = vpop.permute.xlu0 %542
        %544 = vrot.lane.b32.xlu0 %v537, 17
        %v545 = vpop.permute.xlu0 %544
        %v546 = vrot.slane %v539, 4
        %v547 = vrot.slane %v541, 4
        %v548 = vrot.slane %v543, 4
        %v549 = vrot.slane %v545, 4
        %vm550 = vcmask 138240
        %v551 = vsel %vm550, %v546, %v539
        %v552 = vsel %vm550, %v547, %v541
        %v553 = vsel %vm550, %v548, %v543
        %v554 = vsel %vm550, %v549, %v545
        %vm563 = vcmask 1043592
        %vm564 = vcmask 1047556
        %vm565 = vmor %vm564, %vm563
        %566 = vst.msk [vmem:[#allocation3] sm:$0xff] %vm565, %v551
        %567 = vst.msk [vmem:[#allocation3 + $0x8] sm:$0xf] %vm436, %v546
        %568 = vst.msk [vmem:[#allocation3 + $0xc] sm:$0xff] %vm565, %v552
        %569 = vst.msk [vmem:[#allocation3 + $0x14] sm:$0xf] %vm436, %v547
        %570 = vst.msk [vmem:[#allocation3 + $0x18] sm:$0xff] %vm565, %v553
        %571 = vst.msk [vmem:[#allocation3 + $0x20] sm:$0xf] %vm436, %v548
        %572 = vst.msk [vmem:[#allocation3 + $0x24] sm:$0xff] %vm565, %v554
        %573 = vst.msk [vmem:[#allocation3 + $0x2c] sm:$0xf] %vm436, %v549
        %v574 = vld [vmem:[#allocation3] sm:$0xff]
        %v575 = vld [vmem:[#allocation3 + $0xc] sm:$0xff]
        %v576 = vld [vmem:[#allocation3 + $0x18] sm:$0xff]
        %v577 = vld [vmem:[#allocation3 + $0x24] sm:$0xff]
        %vm578 = vcmp.ge.s32.totalorder %v434, 1
        %vm579 = vcmp.ge.s32.totalorder %v435, 1
        %v580 = vsel %vm578, 1, 0
        %v581 = vsel %vm579, 1, 0
        %vm582 = vcmp.eq.s32.totalorder %v580, 1
        %vm583 = vcmp.eq.s32.totalorder %v581, 1
        %vm584 = vmpackc.low %vm583, %vm582
        %v585 = vsel %vm584, %v574, 0
        %v586 = vsel %vm584, %v575, 0
        %v587 = vsel %vm584, %v576, 0
        %v588 = vsel %vm584, %v577, 0
        %589 = vst [vmem:[#allocation2] sm:$0xff] %v585
        %590 = vst [vmem:[#allocation2 + $0x8] sm:$0xff] %v586
        %591 = vst [vmem:[#allocation2 + $0x10] sm:$0xff] %v587
        %592 = vst [vmem:[#allocation2 + $0x18] sm:$0xff] %v588
        %v593 = vld [vmem:[#allocation3] sm:$0xff]
        %v594 = vld [vmem:[#allocation3 + $0x8] sm:$0xf]
        %v595 = vld [vmem:[#allocation3 + $0xc] sm:$0xff]
        %v596 = vld [vmem:[#allocation3 + $0x14] sm:$0xf]
        %v597 = vld [vmem:[#allocation3 + $0x18] sm:$0xff]
        %v598 = vld [vmem:[#allocation3 + $0x20] sm:$0xf]
        %v599 = vld [vmem:[#allocation3 + $0x24] sm:$0xff]
        %v600 = vld [vmem:[#allocation3 + $0x2c] sm:$0xf]
        %609 = vrot.lane.b32.xlu0 %v593, 127
        %v610 = vpop.permute.xlu0 %609
        %611 = vrot.lane.b32.xlu0 %v594, 127
        %v612 = vpop.permute.xlu0 %611
        %613 = vrot.lane.b32.xlu0 %v595, 127
        %v614 = vpop.permute.xlu0 %613
        %615 = vrot.lane.b32.xlu0 %v596, 127
        %v616 = vpop.permute.xlu0 %615
        %617 = vrot.lane.b32.xlu0 %v597, 127
        %v618 = vpop.permute.xlu0 %617
        %619 = vrot.lane.b32.xlu0 %v598, 127
        %v620 = vpop.permute.xlu0 %619
        %621 = vrot.lane.b32.xlu0 %v599, 127
        %v622 = vpop.permute.xlu0 %621
        %623 = vrot.lane.b32.xlu0 %v600, 127
        %v624 = vpop.permute.xlu0 %623
        %v625 = vrot.slane %v610, 4
        %v626 = vrot.slane %v612, 4
        %v627 = vrot.slane %v614, 4
        %v628 = vrot.slane %v616, 4
        %v629 = vrot.slane %v618, 4
        %v630 = vrot.slane %v620, 4
        %v631 = vrot.slane %v622, 4
        %v632 = vrot.slane %v624, 4
        %vm633 = vcmask 1043456
        %v634 = vsel %vm633, %v625, %v626
        %vm635 = vcmask 1039360
        %v636 = vsel %vm635, %v610, %v634
        %v637 = vsel %vm633, %v627, %v628
        %v638 = vsel %vm635, %v614, %v637
        %v639 = vsel %vm633, %v629, %v630
        %v640 = vsel %vm635, %v618, %v639
        %v641 = vsel %vm633, %v631, %v632
        %v642 = vsel %vm635, %v622, %v641
        %647 = vst [vmem:[#allocation2 + $0x20] sm:$0xff] %v636
        %648 = vst [vmem:[#allocation2 + $0x28] sm:$0xff] %v638
        %649 = vst [vmem:[#allocation2 + $0x30] sm:$0xff] %v640
        %650 = vst [vmem:[#allocation2 + $0x38] sm:$0xff] %v642
        %v651 = vld [vmem:[#allocation3] sm:$0xff]
        %v652 = vld [vmem:[#allocation3 + $0x8] sm:$0xf]
        %v653 = vld [vmem:[#allocation3 + $0xc] sm:$0xff]
        %v654 = vld [vmem:[#allocation3 + $0x14] sm:$0xf]
        %v655 = vld [vmem:[#allocation3 + $0x18] sm:$0xff]
        %v656 = vld [vmem:[#allocation3 + $0x20] sm:$0xf]
        %v657 = vld [vmem:[#allocation3 + $0x24] sm:$0xff]
        %v658 = vld [vmem:[#allocation3 + $0x2c] sm:$0xf]
        %vm659 = vcmp.lt.s32.totalorder %v434, 15
        %vm660 = vcmp.lt.s32.totalorder %v435, 15
        %v661 = vsel %vm659, 1, 0
        %v662 = vsel %vm660, 1, 0
        %vm663 = vcmp.eq.s32.totalorder %v661, 1
        %vm664 = vcmp.eq.s32.totalorder %v662, 1
        %vm665 = vmpackc.low %vm664, %vm663
        %v666 = vsel %vm665, 65537, 0
        %667 = vrot.lane.b32.xlu0 %v666, 2
        %v668 = vpop.permute.xlu0 %667
        %v669 = vrot.slane %v668, 4
        %vm670 = vcmask 15360
        %v671 = vsel %vm670, %v669, %v668
        %vm672 = vcmp.ne.s16.totalorder %v671, 0
        %vm673 = vcmp.ne.s16.totalorder %v669, 0
        %v674 = vsel %vm672, %v651, 0
        %v675 = vsel %vm673, %v652, 0
        %v676 = vsel %vm672, %v653, 0
        %v677 = vsel %vm673, %v654, 0
        %v678 = vsel %vm672, %v655, 0
        %v679 = vsel %vm673, %v656, 0
        %v680 = vsel %vm672, %v657, 0
        %v681 = vsel %vm673, %v658, 0
        %690 = vrot.lane.b32.xlu0 %v674, 126
        %v691 = vpop.permute.xlu0 %690
        %692 = vrot.lane.b32.xlu0 %v675, 126
        %v693 = vpop.permute.xlu0 %692
        %694 = vrot.lane.b32.xlu0 %v676, 126
        %v695 = vpop.permute.xlu0 %694
        %696 = vrot.lane.b32.xlu0 %v677, 126
        %v697 = vpop.permute.xlu0 %696
        %698 = vrot.lane.b32.xlu0 %v678, 126
        %v699 = vpop.permute.xlu0 %698
        %700 = vrot.lane.b32.xlu0 %v679, 126
        %v701 = vpop.permute.xlu0 %700
        %702 = vrot.lane.b32.xlu0 %v680, 126
        %v703 = vpop.permute.xlu0 %702
        %704 = vrot.lane.b32.xlu0 %v681, 126
        %v705 = vpop.permute.xlu0 %704
        %v706 = vrot.slane %v691, 4
        %v707 = vrot.slane %v693, 4
        %v708 = vrot.slane %v695, 4
        %v709 = vrot.slane %v697, 4
        %v710 = vrot.slane %v699, 4
        %v711 = vrot.slane %v701, 4
        %v712 = vrot.slane %v703, 4
        %v713 = vrot.slane %v705, 4
        %v714 = vsel %vm633, %v706, %v707
        %vm715 = vcmask 1031168
        %v716 = vsel %vm715, %v691, %v714
        %v717 = vsel %vm633, %v708, %v709
        %v718 = vsel %vm715, %v695, %v717
        %v719 = vsel %vm633, %v710, %v711
        %v720 = vsel %vm715, %v699, %v719
        %v721 = vsel %vm633, %v712, %v713
        %v722 = vsel %vm715, %v703, %v721
        %727 = vst [vmem:[#allocation2 + $0x40] sm:$0xff] %v716
        %728 = vst [vmem:[#allocation2 + $0x48] sm:$0xff] %v718
        %729 = vst [vmem:[#allocation2 + $0x50] sm:$0xff] %v720
        %730 = vst [vmem:[#allocation2 + $0x58] sm:$0xff] %v722
        %v731 = vld [vmem:[#allocation3] sm:$0xff]
        %v732 = vld [vmem:[#allocation3 + $0x8] sm:$0xf]
        %v733 = vld [vmem:[#allocation3 + $0xc] sm:$0xff]
        %v734 = vld [vmem:[#allocation3 + $0x14] sm:$0xf]
        %v735 = vld [vmem:[#allocation3 + $0x18] sm:$0xff]
        %v736 = vld [vmem:[#allocation3 + $0x20] sm:$0xf]
        %v737 = vld [vmem:[#allocation3 + $0x24] sm:$0xff]
        %v738 = vld [vmem:[#allocation3 + $0x2c] sm:$0xf]
        %v739 = vsel %vm584, 65537, 0
        %740 = vrot.lane.b32.xlu0 %v739, 16
        %v741 = vpop.permute.xlu0 %740
        %v742 = vrot.slane %v741, 4
        %vm743 = vcmask 130048
        %v744 = vsel %vm743, %v742, %v741
        %vm745 = vcmp.ne.s16.totalorder %v744, 0
        %vm746 = vcmp.ne.s16.totalorder %v742, 0
        %v747 = vsel %vm745, %v731, 0
        %v748 = vsel %vm746, %v732, 0
        %v749 = vsel %vm745, %v733, 0
        %v750 = vsel %vm746, %v734, 0
        %v751 = vsel %vm745, %v735, 0
        %v752 = vsel %vm746, %v736, 0
        %v753 = vsel %vm745, %v737, 0
        %v754 = vsel %vm746, %v738, 0
        %763 = vrot.lane.b32.xlu0 %v747, 112
        %v764 = vpop.permute.xlu0 %763
        %765 = vrot.lane.b32.xlu0 %v748, 112
        %v766 = vpop.permute.xlu0 %765
        %767 = vrot.lane.b32.xlu0 %v749, 112
        %v768 = vpop.permute.xlu0 %767
        %769 = vrot.lane.b32.xlu0 %v750, 112
        %v770 = vpop.permute.xlu0 %769
        %771 = vrot.lane.b32.xlu0 %v751, 112
        %v772 = vpop.permute.xlu0 %771
        %773 = vrot.lane.b32.xlu0 %v752, 112
        %v774 = vpop.permute.xlu0 %773
        %775 = vrot.lane.b32.xlu0 %v753, 112
        %v776 = vpop.permute.xlu0 %775
        %777 = vrot.lane.b32.xlu0 %v754, 112
        %v778 = vpop.permute.xlu0 %777
        %v779 = vrot.slane %v764, 4
        %v780 = vrot.slane %v766, 4
        %v781 = vrot.slane %v768, 4
        %v782 = vrot.slane %v770, 4
        %v783 = vrot.slane %v772, 4
        %v784 = vrot.slane %v774, 4
        %v785 = vrot.slane %v776, 4
        %v786 = vrot.slane %v778, 4
        %v787 = vsel %vm633, %v779, %v780
        %vm788 = vcmask 916480
        %v789 = vsel %vm788, %v764, %v787
        %v790 = vsel %vm633, %v781, %v782
        %v791 = vsel %vm788, %v768, %v790
        %v792 = vsel %vm633, %v783, %v784
        %v793 = vsel %vm788, %v772, %v792
        %v794 = vsel %vm633, %v785, %v786
        %v795 = vsel %vm788, %v776, %v794
        %800 = vst [vmem:[#allocation2 + $0x60] sm:$0xff] %v789
        %801 = vst [vmem:[#allocation2 + $0x68] sm:$0xff] %v791
        %802 = vst [vmem:[#allocation2 + $0x70] sm:$0xff] %v793
        %803 = vst [vmem:[#allocation2 + $0x78] sm:$0xff] %v795
        %v804 = vld [vmem:[#allocation3] sm:$0xff]
        %v805 = vld [vmem:[#allocation3 + $0x8] sm:$0xf]
        %v806 = vld [vmem:[#allocation3 + $0xc] sm:$0xff]
        %v807 = vld [vmem:[#allocation3 + $0x14] sm:$0xf]
        %v808 = vld [vmem:[#allocation3 + $0x18] sm:$0xff]
        %v809 = vld [vmem:[#allocation3 + $0x20] sm:$0xf]
        %v810 = vld [vmem:[#allocation3 + $0x24] sm:$0xff]
        %v811 = vld [vmem:[#allocation3 + $0x2c] sm:$0xf]
        %820 = vrot.lane.b32.xlu0 %v804, 111
        %v821 = vpop.permute.xlu0 %820
        %822 = vrot.lane.b32.xlu0 %v805, 111
        %v823 = vpop.permute.xlu0 %822
        %824 = vrot.lane.b32.xlu0 %v806, 111
        %v825 = vpop.permute.xlu0 %824
        %826 = vrot.lane.b32.xlu0 %v807, 111
        %v827 = vpop.permute.xlu0 %826
        %828 = vrot.lane.b32.xlu0 %v808, 111
        %v829 = vpop.permute.xlu0 %828
        %830 = vrot.lane.b32.xlu0 %v809, 111
        %v831 = vpop.permute.xlu0 %830
        %832 = vrot.lane.b32.xlu0 %v810, 111
        %v833 = vpop.permute.xlu0 %832
        %834 = vrot.lane.b32.xlu0 %v811, 111
        %v835 = vpop.permute.xlu0 %834
        %v836 = vrot.slane %v821, 4
        %v837 = vrot.slane %v823, 4
        %v838 = vrot.slane %v825, 4
        %v839 = vrot.slane %v827, 4
        %v840 = vrot.slane %v829, 4
        %v841 = vrot.slane %v831, 4
        %v842 = vrot.slane %v833, 4
        %v843 = vrot.slane %v835, 4
        %v844 = vsel %vm633, %v836, %v837
        %vm845 = vcmask 908288
        %v846 = vsel %vm845, %v821, %v844
        %v847 = vsel %vm633, %v838, %v839
        %v848 = vsel %vm845, %v825, %v847
        %v849 = vsel %vm633, %v840, %v841
        %v850 = vsel %vm845, %v829, %v849
        %v851 = vsel %vm633, %v842, %v843
        %v852 = vsel %vm845, %v833, %v851
        %857 = vst [vmem:[#allocation2 + $0x80] sm:$0xff] %v846
        %858 = vst [vmem:[#allocation2 + $0x88] sm:$0xff] %v848
        %859 = vst [vmem:[#allocation2 + $0x90] sm:$0xff] %v850
        %860 = vst [vmem:[#allocation2 + $0x98] sm:$0xff] %v852
        %v861 = vld [vmem:[#allocation3] sm:$0xff]
        %v862 = vld [vmem:[#allocation3 + $0x8] sm:$0xf]
        %v863 = vld [vmem:[#allocation3 + $0xc] sm:$0xff]
        %v864 = vld [vmem:[#allocation3 + $0x14] sm:$0xf]
        %v865 = vld [vmem:[#allocation3 + $0x18] sm:$0xff]
        %v866 = vld [vmem:[#allocation3 + $0x20] sm:$0xf]
        %v867 = vld [vmem:[#allocation3 + $0x24] sm:$0xff]
        %v868 = vld [vmem:[#allocation3 + $0x2c] sm:$0xf]
        %869 = vrot.lane.b32.xlu0 %v666, 18
        %v870 = vpop.permute.xlu0 %869
        %v871 = vrot.slane %v870, 4
        %vm872 = vcmask 146432
        %v873 = vsel %vm872, %v871, %v870
        %vm874 = vcmp.ne.s16.totalorder %v873, 0
        %vm875 = vcmp.ne.s16.totalorder %v871, 0
        %v876 = vsel %vm874, %v861, 0
        %v877 = vsel %vm875, %v862, 0
        %v878 = vsel %vm874, %v863, 0
        %v879 = vsel %vm875, %v864, 0
        %v880 = vsel %vm874, %v865, 0
        %v881 = vsel %vm875, %v866, 0
        %v882 = vsel %vm874, %v867, 0
        %v883 = vsel %vm875, %v868, 0
        %892 = vrot.lane.b32.xlu0 %v876, 110
        %v893 = vpop.permute.xlu0 %892
        %894 = vrot.lane.b32.xlu0 %v877, 110
        %v895 = vpop.permute.xlu0 %894
        %896 = vrot.lane.b32.xlu0 %v878, 110
        %v897 = vpop.permute.xlu0 %896
        %898 = vrot.lane.b32.xlu0 %v879, 110
        %v899 = vpop.permute.xlu0 %898
        %900 = vrot.lane.b32.xlu0 %v880, 110
        %v901 = vpop.permute.xlu0 %900
        %902 = vrot.lane.b32.xlu0 %v881, 110
        %v903 = vpop.permute.xlu0 %902
        %904 = vrot.lane.b32.xlu0 %v882, 110
        %v905 = vpop.permute.xlu0 %904
        %906 = vrot.lane.b32.xlu0 %v883, 110
        %v907 = vpop.permute.xlu0 %906
        %v908 = vrot.slane %v893, 4
        %v909 = vrot.slane %v895, 4
        %v910 = vrot.slane %v897, 4
        %v911 = vrot.slane %v899, 4
        %v912 = vrot.slane %v901, 4
        %v913 = vrot.slane %v903, 4
        %v914 = vrot.slane %v905, 4
        %v915 = vrot.slane %v907, 4
        %v916 = vsel %vm633, %v908, %v909
        %vm917 = vcmask 900096
        %v918 = vsel %vm917, %v893, %v916
        %v919 = vsel %vm633, %v910, %v911
        %v920 = vsel %vm917, %v897, %v919
        %v921 = vsel %vm633, %v912, %v913
        %v922 = vsel %vm917, %v901, %v921
        %v923 = vsel %vm633, %v914, %v915
        %v924 = vsel %vm917, %v905, %v923
        %929 = vst [vmem:[#allocation2 + $0xa0] sm:$0xff] %v918
        %930 = vst [vmem:[#allocation2 + $0xa8] sm:$0xff] %v920
        %931 = vst [vmem:[#allocation2 + $0xb0] sm:$0xff] %v922
        %932 = vst [vmem:[#allocation2 + $0xb8] sm:$0xff] %v924
        %v933 = vld [vmem:[#allocation3] sm:$0xff]
        %v934 = vld [vmem:[#allocation3 + $0x8] sm:$0xf]
        %v935 = vld [vmem:[#allocation3 + $0xc] sm:$0xff]
        %v936 = vld [vmem:[#allocation3 + $0x14] sm:$0xf]
        %v937 = vld [vmem:[#allocation3 + $0x18] sm:$0xff]
        %v938 = vld [vmem:[#allocation3 + $0x20] sm:$0xf]
        %v939 = vld [vmem:[#allocation3 + $0x24] sm:$0xff]
        %v940 = vld [vmem:[#allocation3 + $0x2c] sm:$0xf]
        %941 = vrot.lane.b32.xlu0 %v739, 32
        %v942 = vpop.permute.xlu0 %941
        %v943 = vrot.slane %v942, 4
        %vm944 = vcmask 261120
        %v945 = vsel %vm944, %v943, %v942
        %vm946 = vcmp.ne.s16.totalorder %v945, 0
        %vm947 = vcmp.ne.s16.totalorder %v943, 0
        %v948 = vsel %vm946, %v933, 0
        %v949 = vsel %vm947, %v934, 0
        %v950 = vsel %vm946, %v935, 0
        %v951 = vsel %vm947, %v936, 0
        %v952 = vsel %vm946, %v937, 0
        %v953 = vsel %vm947, %v938, 0
        %v954 = vsel %vm946, %v939, 0
        %v955 = vsel %vm947, %v940, 0
        %964 = vrot.lane.b32.xlu0 %v948, 96
        %v965 = vpop.permute.xlu0 %964
        %966 = vrot.lane.b32.xlu0 %v949, 96
        %v967 = vpop.permute.xlu0 %966
        %968 = vrot.lane.b32.xlu0 %v950, 96
        %v969 = vpop.permute.xlu0 %968
        %970 = vrot.lane.b32.xlu0 %v951, 96
        %v971 = vpop.permute.xlu0 %970
        %972 = vrot.lane.b32.xlu0 %v952, 96
        %v973 = vpop.permute.xlu0 %972
        %974 = vrot.lane.b32.xlu0 %v953, 96
        %v975 = vpop.permute.xlu0 %974
        %976 = vrot.lane.b32.xlu0 %v954, 96
        %v977 = vpop.permute.xlu0 %976
        %978 = vrot.lane.b32.xlu0 %v955, 96
        %v979 = vpop.permute.xlu0 %978
        %v980 = vrot.slane %v965, 4
        %v981 = vrot.slane %v967, 4
        %v982 = vrot.slane %v969, 4
        %v983 = vrot.slane %v971, 4
        %v984 = vrot.slane %v973, 4
        %v985 = vrot.slane %v975, 4
        %v986 = vrot.slane %v977, 4
        %v987 = vrot.slane %v979, 4
        %v988 = vsel %vm633, %v980, %v981
        %vm989 = vcmask 785408
        %v990 = vsel %vm989, %v965, %v988
        %v991 = vsel %vm633, %v982, %v983
        %v992 = vsel %vm989, %v969, %v991
        %v993 = vsel %vm633, %v984, %v985
        %v994 = vsel %vm989, %v973, %v993
        %v995 = vsel %vm633, %v986, %v987
        %v996 = vsel %vm989, %v977, %v995
        %1001 = vst [vmem:[#allocation2 + $0xc0] sm:$0xff] %v990
        %1002 = vst [vmem:[#allocation2 + $0xc8] sm:$0xff] %v992
        %1003 = vst [vmem:[#allocation2 + $0xd0] sm:$0xff] %v994
        %1004 = vst [vmem:[#allocation2 + $0xd8] sm:$0xff] %v996
        %v1005 = vld [vmem:[#allocation3] sm:$0xff]
        %v1006 = vld [vmem:[#allocation3 + $0x8] sm:$0xf]
        %v1007 = vld [vmem:[#allocation3 + $0xc] sm:$0xff]
        %v1008 = vld [vmem:[#allocation3 + $0x14] sm:$0xf]
        %v1009 = vld [vmem:[#allocation3 + $0x18] sm:$0xff]
        %v1010 = vld [vmem:[#allocation3 + $0x20] sm:$0xf]
        %v1011 = vld [vmem:[#allocation3 + $0x24] sm:$0xff]
        %v1012 = vld [vmem:[#allocation3 + $0x2c] sm:$0xf]
        %1021 = vrot.lane.b32.xlu0 %v1005, 95
        %v1022 = vpop.permute.xlu0 %1021
        %1023 = vrot.lane.b32.xlu0 %v1006, 95
        %v1024 = vpop.permute.xlu0 %1023
        %1025 = vrot.lane.b32.xlu0 %v1007, 95
        %v1026 = vpop.permute.xlu0 %1025
        %1027 = vrot.lane.b32.xlu0 %v1008, 95
        %v1028 = vpop.permute.xlu0 %1027
        %1029 = vrot.lane.b32.xlu0 %v1009, 95
        %v1030 = vpop.permute.xlu0 %1029
        %1031 = vrot.lane.b32.xlu0 %v1010, 95
        %v1032 = vpop.permute.xlu0 %1031
        %1033 = vrot.lane.b32.xlu0 %v1011, 95
        %v1034 = vpop.permute.xlu0 %1033
        %1035 = vrot.lane.b32.xlu0 %v1012, 95
        %v1036 = vpop.permute.xlu0 %1035
        %v1037 = vrot.slane %v1022, 4
        %v1038 = vrot.slane %v1024, 4
        %v1039 = vrot.slane %v1026, 4
        %v1040 = vrot.slane %v1028, 4
        %v1041 = vrot.slane %v1030, 4
        %v1042 = vrot.slane %v1032, 4
        %v1043 = vrot.slane %v1034, 4
        %v1044 = vrot.slane %v1036, 4
        %v1045 = vsel %vm633, %v1037, %v1038
        %vm1046 = vcmask 777216
        %v1047 = vsel %vm1046, %v1022, %v1045
        %v1048 = vsel %vm633, %v1039, %v1040
        %v1049 = vsel %vm1046, %v1026, %v1048
        %v1050 = vsel %vm633, %v1041, %v1042
        %v1051 = vsel %vm1046, %v1030, %v1050
        %v1052 = vsel %vm633, %v1043, %v1044
        %v1053 = vsel %vm1046, %v1034, %v1052
        %1058 = vst [vmem:[#allocation2 + $0xe0] sm:$0xff] %v1047
        %1059 = vst [vmem:[#allocation2 + $0xe8] sm:$0xff] %v1049
        %1060 = vst [vmem:[#allocation2 + $0xf0] sm:$0xff] %v1051
        %1061 = vst [vmem:[#allocation2 + $0xf8] sm:$0xff] %v1053
        %v1062 = vld [vmem:[#allocation3] sm:$0xff]
        %v1063 = vld [vmem:[#allocation3 + $0x8] sm:$0xf]
        %v1064 = vld [vmem:[#allocation3 + $0xc] sm:$0xff]
        %v1065 = vld [vmem:[#allocation3 + $0x14] sm:$0xf]
        %v1066 = vld [vmem:[#allocation3 + $0x18] sm:$0xff]
        %v1067 = vld [vmem:[#allocation3 + $0x20] sm:$0xf]
        %v1068 = vld [vmem:[#allocation3 + $0x24] sm:$0xff]
        %v1069 = vld [vmem:[#allocation3 + $0x2c] sm:$0xf]
        %1070 = vrot.lane.b32.xlu0 %v666, 34
        %v1071 = vpop.permute.xlu0 %1070
        %v1072 = vrot.slane %v1071, 4
        %vm1073 = vcmask 277504
        %v1074 = vsel %vm1073, %v1072, %v1071
        %vm1075 = vcmp.ne.s16.totalorder %v1074, 0
        %vm1076 = vcmp.ne.s16.totalorder %v1072, 0
        %v1077 = vsel %vm1075, %v1062, 0
        %v1078 = vsel %vm1076, %v1063, 0
        %v1079 = vsel %vm1075, %v1064, 0
        %v1080 = vsel %vm1076, %v1065, 0
        %v1081 = vsel %vm1075, %v1066, 0
        %v1082 = vsel %vm1076, %v1067, 0
        %v1083 = vsel %vm1075, %v1068, 0
        %v1084 = vsel %vm1076, %v1069, 0
        %1093 = vrot.lane.b32.xlu0 %v1077, 94
        %v1094 = vpop.permute.xlu0 %1093
        %1095 = vrot.lane.b32.xlu0 %v1078, 94
        %v1096 = vpop.permute.xlu0 %1095
        %1097 = vrot.lane.b32.xlu0 %v1079, 94
        %v1098 = vpop.permute.xlu0 %1097
        %1099 = vrot.lane.b32.xlu0 %v1080, 94
        %v1100 = vpop.permute.xlu0 %1099
        %1101 = vrot.lane.b32.xlu0 %v1081, 94
        %v1102 = vpop.permute.xlu0 %1101
        %1103 = vrot.lane.b32.xlu0 %v1082, 94
        %v1104 = vpop.permute.xlu0 %1103
        %1105 = vrot.lane.b32.xlu0 %v1083, 94
        %v1106 = vpop.permute.xlu0 %1105
        %1107 = vrot.lane.b32.xlu0 %v1084, 94
        %v1108 = vpop.permute.xlu0 %1107
        %v1109 = vrot.slane %v1094, 4
        %v1110 = vrot.slane %v1096, 4
        %v1111 = vrot.slane %v1098, 4
        %v1112 = vrot.slane %v1100, 4
        %v1113 = vrot.slane %v1102, 4
        %v1114 = vrot.slane %v1104, 4
        %v1115 = vrot.slane %v1106, 4
        %v1116 = vrot.slane %v1108, 4
        %v1117 = vsel %vm633, %v1109, %v1110
        %vm1118 = vcmask 769024
        %v1119 = vsel %vm1118, %v1094, %v1117
        %v1120 = vsel %vm633, %v1111, %v1112
        %v1121 = vsel %vm1118, %v1098, %v1120
        %v1122 = vsel %vm633, %v1113, %v1114
        %v1123 = vsel %vm1118, %v1102, %v1122
        %v1124 = vsel %vm633, %v1115, %v1116
        %v1125 = vsel %vm1118, %v1106, %v1124
        %1130 = vst [vmem:[#allocation2 + $0x100] sm:$0xff] %v1119
        %1131 = vst [vmem:[#allocation2 + $0x108] sm:$0xff] %v1121
        %1132 = vst [vmem:[#allocation2 + $0x110] sm:$0xff] %v1123
        %1133 = vst [vmem:[#allocation2 + $0x118] sm:$0xff] %v1125
        %v1134 = vld [vmem:[%s3] sm:$0xff]
        %v1135 = vld [vmem:[%s3 + $0x8] sm:$0xf]
        %v1136 = vld [vmem:[%s3 + $0xc] sm:$0xff]
        %v1137 = vld [vmem:[%s3 + $0x14] sm:$0xf]
        %v1138 = vld [vmem:[%s3 + $0x18] sm:$0xff]
        %v1139 = vld [vmem:[%s3 + $0x20] sm:$0xf]
        %v1140 = vld [vmem:[%s3 + $0x24] sm:$0xff]
        %v1141 = vld [vmem:[%s3 + $0x2c] sm:$0xf]
        %v1142 = vld [vmem:[#allocation2] sm:$0xff]
        %v1143 = vld [vmem:[#allocation2 + $0x8] sm:$0xff]
        %v1144 = vld [vmem:[#allocation2 + $0x10] sm:$0xff]
        %v1145 = vld [vmem:[#allocation2 + $0x18] sm:$0xff]
        %v1146 = vld [vmem:[#allocation2 + $0x20] sm:$0xff]
        %v1147 = vld [vmem:[#allocation2 + $0x28] sm:$0xff]
        %v1148 = vld [vmem:[#allocation2 + $0x30] sm:$0xff]
        %v1149 = vld [vmem:[#allocation2 + $0x38] sm:$0xff]
        %v1150 = vld [vmem:[#allocation2 + $0x40] sm:$0xff]
        %v1151 = vld [vmem:[#allocation2 + $0x48] sm:$0xff]
        %v1152 = vld [vmem:[#allocation2 + $0x50] sm:$0xff]
        %v1153 = vld [vmem:[#allocation2 + $0x58] sm:$0xff]
        %v1154 = vld [vmem:[#allocation2 + $0x60] sm:$0xff]
        %v1155 = vld [vmem:[#allocation2 + $0x68] sm:$0xff]
        %v1156 = vld [vmem:[#allocation2 + $0x70] sm:$0xff]
        %v1157 = vld [vmem:[#allocation2 + $0x78] sm:$0xff]
        %v1158 = vld [vmem:[#allocation2 + $0x80] sm:$0xff]
        %v1159 = vld [vmem:[#allocation2 + $0x88] sm:$0xff]
        %v1160 = vld [vmem:[#allocation2 + $0x90] sm:$0xff]
        %v1161 = vld [vmem:[#allocation2 + $0x98] sm:$0xff]
        %v1162 = vld [vmem:[#allocation2 + $0xa0] sm:$0xff]
        %v1163 = vld [vmem:[#allocation2 + $0xa8] sm:$0xff]
        %v1164 = vld [vmem:[#allocation2 + $0xb0] sm:$0xff]
        %v1165 = vld [vmem:[#allocation2 + $0xb8] sm:$0xff]
        %v1166 = vld [vmem:[#allocation2 + $0xc0] sm:$0xff]
        %v1167 = vld [vmem:[#allocation2 + $0xc8] sm:$0xff]
        %v1168 = vld [vmem:[#allocation2 + $0xd0] sm:$0xff]
        %v1169 = vld [vmem:[#allocation2 + $0xd8] sm:$0xff]
        %v1170 = vld [vmem:[#allocation2 + $0xe0] sm:$0xff]
        %v1171 = vld [vmem:[#allocation2 + $0xe8] sm:$0xff]
        %v1172 = vld [vmem:[#allocation2 + $0xf0] sm:$0xff]
        %v1173 = vld [vmem:[#allocation2 + $0xf8] sm:$0xff]
        %v1174 = vld [vmem:[#allocation2 + $0x100] sm:$0xff]
        %v1175 = vld [vmem:[#allocation2 + $0x108] sm:$0xff]
        %v1176 = vld [vmem:[#allocation2 + $0x110] sm:$0xff]
        %v1177 = vld [vmem:[#allocation2 + $0x118] sm:$0xff]
        %v1178 = vld [vmem:[%s4] sm:$0xff]
        %v1179 = vld [vmem:[%s4 + $0x8] sm:$0xff]
        %v1180 = vld [vmem:[%s4 + $0x10] sm:$0xff]
        %v1181 = vld [vmem:[%s4 + $0x18] sm:$0xff]
        %1183 = vset.pattern.permute.xlu0 0
        %1184 = vperm.xlu0 %1183, %v1178
        %v1185 = vpop.permute.xlu0 %1184
        %1188 = vset.pattern.permute.xlu0 0
        %1189 = vperm.xlu0 %1188, %v1179
        %v1190 = vpop.permute.xlu0 %1189
        %1193 = vset.pattern.permute.xlu0 0
        %1194 = vperm.xlu0 %1193, %v1180
        %v1195 = vpop.permute.xlu0 %1194
        %1198 = vset.pattern.permute.xlu0 0
        %1199 = vperm.xlu0 %1198, %v1181
        %v1200 = vpop.permute.xlu0 %1199
        %v1210 = vunpack.c.l.b16 %v1134
        %v1211 = vunpack.c.h.b16 %v1134
        %v1212 = vunpack.c.l.b16 %v1135
        %v1213 = vunpack.c.l.b16 %v1136
        %v1214 = vunpack.c.h.b16 %v1136
        %v1215 = vunpack.c.l.b16 %v1137
        %v1216 = vunpack.c.l.b16 %v1138
        %v1217 = vunpack.c.h.b16 %v1138
        %v1218 = vunpack.c.l.b16 %v1139
        %v1219 = vunpack.c.l.b16 %v1140
        %v1220 = vunpack.c.h.b16 %v1140
        %v1221 = vunpack.c.l.b16 %v1141
        %v1222 = vpack.c.b16 %v1213, %v1210
        %v1223 = vpack.c.b16 %v1214, %v1211
        %v1224 = vpack.c.b16 %v1215, %v1212
        %v1225 = vpack.c.b16 %v1219, %v1216
        %v1226 = vpack.c.b16 %v1220, %v1217
        %v1227 = vpack.c.b16 %v1221, %v1218
        %v1268 = vunpack.c.l.b16 %v1142
        %v1269 = vunpack.c.h.b16 %v1142
        %v1270 = vunpack.c.l.b16 %v1143
        %v1271 = vunpack.c.h.b16 %v1143
        %v1272 = vunpack.c.l.b16 %v1144
        %v1273 = vunpack.c.h.b16 %v1144
        %v1274 = vunpack.c.l.b16 %v1145
        %v1275 = vunpack.c.h.b16 %v1145
        %v1276 = vunpack.c.l.b16 %v1146
        %v1277 = vunpack.c.h.b16 %v1146
        %v1278 = vunpack.c.l.b16 %v1147
        %v1279 = vunpack.c.h.b16 %v1147
        %v1280 = vunpack.c.l.b16 %v1148
        %v1281 = vunpack.c.h.b16 %v1148
        %v1282 = vunpack.c.l.b16 %v1149
        %v1283 = vunpack.c.h.b16 %v1149
        %v1284 = vunpack.c.l.b16 %v1150
        %v1285 = vunpack.c.h.b16 %v1150
        %v1286 = vunpack.c.l.b16 %v1151
        %v1287 = vunpack.c.h.b16 %v1151
        %v1288 = vunpack.c.l.b16 %v1152
        %v1289 = vunpack.c.h.b16 %v1152
        %v1290 = vunpack.c.l.b16 %v1153
        %v1291 = vunpack.c.h.b16 %v1153
        %v1292 = vunpack.c.l.b16 %v1154
        %v1293 = vunpack.c.h.b16 %v1154
        %v1294 = vunpack.c.l.b16 %v1155
        %v1295 = vunpack.c.h.b16 %v1155
        %v1296 = vunpack.c.l.b16 %v1156
        %v1297 = vunpack.c.h.b16 %v1156
        %v1298 = vunpack.c.l.b16 %v1157
        %v1299 = vunpack.c.h.b16 %v1157
        %v1300 = vunpack.c.l.b16 %v1158
        %v1301 = vunpack.c.h.b16 %v1158
        %v1302 = vunpack.c.l.b16 %v1159
        %v1303 = vunpack.c.h.b16 %v1159
        %v1304 = vunpack.c.l.b16 %v1160
        %v1305 = vunpack.c.h.b16 %v1160
        %v1306 = vunpack.c.l.b16 %v1161
        %v1307 = vunpack.c.h.b16 %v1161
        %v1308 = vunpack.c.l.b16 %v1162
        %v1309 = vunpack.c.h.b16 %v1162
        %v1310 = vunpack.c.l.b16 %v1163
        %v1311 = vunpack.c.h.b16 %v1163
        %v1312 = vunpack.c.l.b16 %v1164
        %v1313 = vunpack.c.h.b16 %v1164
        %v1314 = vunpack.c.l.b16 %v1165
        %v1315 = vunpack.c.h.b16 %v1165
        %v1316 = vunpack.c.l.b16 %v1166
        %v1317 = vunpack.c.h.b16 %v1166
        %v1318 = vunpack.c.l.b16 %v1167
        %v1319 = vunpack.c.h.b16 %v1167
        %v1320 = vunpack.c.l.b16 %v1168
        %v1321 = vunpack.c.h.b16 %v1168
        %v1322 = vunpack.c.l.b16 %v1169
        %v1323 = vunpack.c.h.b16 %v1169
        %v1324 = vunpack.c.l.b16 %v1170
        %v1325 = vunpack.c.h.b16 %v1170
        %v1326 = vunpack.c.l.b16 %v1171
        %v1327 = vunpack.c.h.b16 %v1171
        %v1328 = vunpack.c.l.b16 %v1172
        %v1329 = vunpack.c.h.b16 %v1172
        %v1330 = vunpack.c.l.b16 %v1173
        %v1331 = vunpack.c.h.b16 %v1173
        %v1332 = vunpack.c.l.b16 %v1174
        %v1333 = vunpack.c.h.b16 %v1174
        %v1334 = vunpack.c.l.b16 %v1175
        %v1335 = vunpack.c.h.b16 %v1175
        %v1336 = vunpack.c.l.b16 %v1176
        %v1337 = vunpack.c.h.b16 %v1176
        %v1338 = vunpack.c.l.b16 %v1177
        %v1339 = vunpack.c.h.b16 %v1177
        %v1340 = vpack.c.b16 %v1270, %v1268
        %v1341 = vpack.c.b16 %v1271, %v1269
        %v1342 = vpack.c.b16 %v1274, %v1272
        %v1343 = vpack.c.b16 %v1275, %v1273
        %v1344 = vpack.c.b16 %v1278, %v1276
        %v1345 = vpack.c.b16 %v1279, %v1277
        %v1346 = vpack.c.b16 %v1282, %v1280
        %v1347 = vpack.c.b16 %v1283, %v1281
        %v1348 = vpack.c.b16 %v1286, %v1284
        %v1349 = vpack.c.b16 %v1287, %v1285
        %v1350 = vpack.c.b16 %v1290, %v1288
        %v1351 = vpack.c.b16 %v1291, %v1289
        %v1352 = vpack.c.b16 %v1294, %v1292
        %v1353 = vpack.c.b16 %v1295, %v1293
        %v1354 = vpack.c.b16 %v1298, %v1296
        %v1355 = vpack.c.b16 %v1299, %v1297
        %v1356 = vpack.c.b16 %v1302, %v1300
        %v1357 = vpack.c.b16 %v1303, %v1301
        %v1358 = vpack.c.b16 %v1306, %v1304
        %v1359 = vpack.c.b16 %v1307, %v1305
        %v1360 = vpack.c.b16 %v1310, %v1308
        %v1361 = vpack.c.b16 %v1311, %v1309
        %v1362 = vpack.c.b16 %v1314, %v1312
        %v1363 = vpack.c.b16 %v1315, %v1313
        %v1364 = vpack.c.b16 %v1318, %v1316
        %v1365 = vpack.c.b16 %v1319, %v1317
        %v1366 = vpack.c.b16 %v1322, %v1320
        %v1367 = vpack.c.b16 %v1323, %v1321
        %v1368 = vpack.c.b16 %v1326, %v1324
        %v1369 = vpack.c.b16 %v1327, %v1325
        %v1370 = vpack.c.b16 %v1330, %v1328
        %v1371 = vpack.c.b16 %v1331, %v1329
        %v1372 = vpack.c.b16 %v1334, %v1332
        %v1373 = vpack.c.b16 %v1335, %v1333
        %v1374 = vpack.c.b16 %v1338, %v1336
        %v1375 = vpack.c.b16 %v1339, %v1337
        %vm1412 = vcmask 261120
        %v1414 = vsel %vm1412, %v1224, 0
        %v1417 = vsel %vm1412, %v1227, 0
        %1419 = vmatprep.subr.bf16.mxu0 %v1355
        %1420 = vmatpush1.bf16.msra.mxu0 %v1354
        %1421 = vmatprep.subr.bf16.mxu0 %v1353
        %1422 = vmatpush1.bf16.msra.mxu0 %v1352
        %1423 = vmatprep.subr.bf16.mxu0 %v1351
        %1424 = vmatpush1.bf16.msra.mxu0 %v1350
        %1425 = vmatprep.subr.bf16.mxu0 %v1349
        %1426 = vmatpush1.bf16.msra.mxu0 %v1348
        %1427 = vmatprep.subr.bf16.mxu0 %v1347
        %1428 = vmatpush1.bf16.msra.mxu0 %v1346
        %1429 = vmatprep.subr.bf16.mxu0 %v1345
        %1430 = vmatpush1.bf16.msra.mxu0 %v1344
        %1431 = vmatprep.subr.bf16.mxu0 %v1343
        %1432 = vmatpush1.bf16.msra.mxu0 %v1342
        %1433 = vmatprep.subr.bf16.mxu0 %v1341
        %1434 = vmatpush1.bf16.msra.mxu0 %v1340
        %1435 = vmatprep.subr.bf16.mxu0 %v1371
        %1436 = vmatpush2.bf16.msra.mxu0 %v1370
        %1437 = vmatprep.subr.bf16.mxu0 %v1369
        %1438 = vmatpush2.bf16.msra.mxu0 %v1368
        %1439 = vmatprep.subr.bf16.mxu0 %v1367
        %1440 = vmatpush2.bf16.msra.mxu0 %v1366
        %1441 = vmatprep.subr.bf16.mxu0 %v1365
        %1442 = vmatpush2.bf16.msra.mxu0 %v1364
        %1443 = vmatprep.subr.bf16.mxu0 %v1363
        %1444 = vmatpush2.bf16.msra.mxu0 %v1362
        %1445 = vmatprep.subr.bf16.mxu0 %v1361
        %1446 = vmatpush2.bf16.msra.mxu0 %v1360
        %1447 = vmatprep.subr.bf16.mxu0 %v1359
        %1448 = vmatpush2.bf16.msra.mxu0 %v1358
        %1449 = vmatprep.subr.bf16.mxu0 %v1357
        %1450 = vmatpush2.bf16.msra.mxu0 %v1356
        %1451 = vmatprep.mubr.bf16.mxu0 %v1223
        %1452 = vmatmul.mubr.bf16.gmra.mxu0 %v1222
        %v1453 = vpop.f32.mrf.mxu0
        %v1454 = vadd.f32 %v1185, %v1453
        %v1455 = vpop.f32.mrf.mxu0
        %v1456 = vadd.f32 %v1185, %v1455
        %v1457 = vpop.f32.mrf.mxu0
        %v1458 = vadd.f32 %v1190, %v1457
        %v1459 = vpop.f32.mrf.mxu0
        %v1460 = vadd.f32 %v1190, %v1459
        %1461 = vmatprep.mubr.bf16.mxu0 %v1226
        %1462 = vmatmul.mubr.bf16.gmra.mxu0 %v1225
        %v1463 = vpop.f32.mrf.mxu0
        %v1464 = vadd.f32 %v1195, %v1463
        %v1465 = vpop.f32.mrf.mxu0
        %v1466 = vadd.f32 %v1195, %v1465
        %v1467 = vpop.f32.mrf.mxu0
        %v1468 = vadd.f32 %v1200, %v1467
        %v1469 = vpop.f32.mrf.mxu0
        %v1470 = vadd.f32 %v1200, %v1469
        %1471 = vdwg.mxu0
        %1472 = vmatprep.subr.bf16.mxu0 0
        %1473 = vmatpush1.bf16.msra.mxu0 0
        %1474 = vmatprep.subr.bf16.mxu0 0
        %1475 = vmatpush1.bf16.msra.mxu0 0
        %1476 = vmatprep.subr.bf16.mxu0 0
        %1477 = vmatpush1.bf16.msra.mxu0 0
        %1478 = vmatprep.subr.bf16.mxu0 0
        %1479 = vmatpush1.bf16.msra.mxu0 0
        %1480 = vmatprep.subr.bf16.mxu0 0
        %1481 = vmatpush1.bf16.msra.mxu0 0
        %1482 = vmatprep.subr.bf16.mxu0 0
        %1483 = vmatpush1.bf16.msra.mxu0 0
        %1484 = vmatprep.subr.bf16.mxu0 %v1375
        %1485 = vmatpush1.bf16.msra.mxu0 %v1374
        %1486 = vmatprep.subr.bf16.mxu0 %v1373
        %1487 = vmatpush1.bf16.msra.mxu0 %v1372
        %1488 = vmatprep.subr.bf16.mxu0 0
        %1489 = vmatpush2.bf16.msra.mxu0 0
        %1490 = vmatprep.subr.bf16.mxu0 0
        %1491 = vmatpush2.bf16.msra.mxu0 0
        %1492 = vmatprep.subr.bf16.mxu0 0
        %1493 = vmatpush2.bf16.msra.mxu0 0
        %1494 = vmatprep.subr.bf16.mxu0 0
        %1495 = vmatpush2.bf16.msra.mxu0 0
        %1496 = vmatprep.subr.bf16.mxu0 0
        %1497 = vmatpush2.bf16.msra.mxu0 0
        %1498 = vmatprep.subr.bf16.mxu0 0
        %1499 = vmatpush2.bf16.msra.mxu0 0
        %1500 = vmatprep.subr.bf16.mxu0 0
        %1501 = vmatpush2.bf16.msra.mxu0 0
        %1502 = vmatprep.subr.bf16.mxu0 0
        %1503 = vmatpush2.bf16.msra.mxu0 0
        %1504 = vmatprep.mubr.bf16.mxu0 0
        %1505 = vmatmul.mubr.bf16.gmra.mxu0 %v1414
        %v1506 = vpop.f32.mrf.mxu0
        %v1507 = vadd.f32 %v1454, %v1506
        %v1508 = vpop.f32.mrf.mxu0
        %v1509 = vadd.f32 %v1456, %v1508
        %v1510 = vpop.f32.mrf.mxu0
        %v1511 = vadd.f32 %v1458, %v1510
        %v1512 = vpop.f32.mrf.mxu0
        %v1513 = vadd.f32 %v1460, %v1512
        %1514 = vmatprep.mubr.bf16.mxu0 0
        %1515 = vmatmul.mubr.bf16.gmra.mxu0 %v1417
        %v1516 = vpop.f32.mrf.mxu0
        %v1517 = vadd.f32 %v1464, %v1516
        %v1518 = vpop.f32.mrf.mxu0
        %v1519 = vadd.f32 %v1466, %v1518
        %v1520 = vpop.f32.mrf.mxu0
        %v1521 = vadd.f32 %v1468, %v1520
        %v1522 = vpop.f32.mrf.mxu0
        %v1523 = vadd.f32 %v1470, %v1522
        %1524 = vdwg.mxu0
        %vm1525 = vcmp.ge.f32.partialorder %v1507, 0.0
        %vm1526 = vcmp.ge.f32.partialorder %v1509, 0.0
        %vm1527 = vcmp.ge.f32.partialorder %v1511, 0.0
        %vm1528 = vcmp.ge.f32.partialorder %v1513, 0.0
        %vm1529 = vcmp.ge.f32.partialorder %v1517, 0.0
        %vm1530 = vcmp.ge.f32.partialorder %v1519, 0.0
        %vm1531 = vcmp.ge.f32.partialorder %v1521, 0.0
        %vm1532 = vcmp.ge.f32.partialorder %v1523, 0.0
        %v1533 = vstv %s429
        %v1534 = vmul.f32 %v1533, %v1507
        %v1535 = vmul.f32 %v1533, %v1509
        %v1536 = vmul.f32 %v1533, %v1511
        %v1537 = vmul.f32 %v1533, %v1513
        %v1538 = vmul.f32 %v1533, %v1517
        %v1539 = vmul.f32 %v1533, %v1519
        %v1540 = vmul.f32 %v1533, %v1521
        %v1541 = vmul.f32 %v1533, %v1523
        %v1542 = vsel %vm1525, %v1507, %v1534
        %v1543 = vsel %vm1526, %v1509, %v1535
        %v1544 = vsel %vm1527, %v1511, %v1536
        %v1545 = vsel %vm1528, %v1513, %v1537
        %v1546 = vsel %vm1529, %v1517, %v1538
        %v1547 = vsel %vm1530, %v1519, %v1539
        %v1548 = vsel %vm1531, %v1521, %v1540
        %v1549 = vsel %vm1532, %v1523, %v1541
        %v1550 = vpack.c.bf16 %v1544, %v1542
        %v1551 = vpack.c.bf16 %v1545, %v1543
        %v1552 = vpack.c.bf16 %v1548, %v1546
        %v1553 = vpack.c.bf16 %v1549, %v1547
        %v1558 = vunpack.c.l.b16 %v1550
        %v1559 = vunpack.c.l.b16 %v1551
        %v1560 = vunpack.c.h.b16 %v1550
        %v1561 = vunpack.c.h.b16 %v1551
        %v1562 = vunpack.c.l.b16 %v1552
        %v1563 = vunpack.c.l.b16 %v1553
        %v1564 = vunpack.c.h.b16 %v1552
        %v1565 = vunpack.c.h.b16 %v1553
        %v1566 = vpack.c.b16 %v1559, %v1558
        %v1567 = vpack.c.b16 %v1561, %v1560
        %v1568 = vpack.c.b16 %v1563, %v1562
        %v1569 = vpack.c.b16 %v1565, %v1564
        %1570 = vrot.lane.b32.xlu0 %v1566, 17
        %v1571 = vpop.permute.xlu0 %1570
        %1572 = vrot.lane.b32.xlu0 %v1567, 17
        %v1573 = vpop.permute.xlu0 %1572
        %1574 = vrot.lane.b32.xlu0 %v1568, 17
        %v1575 = vpop.permute.xlu0 %1574
        %1576 = vrot.lane.b32.xlu0 %v1569, 17
        %v1577 = vpop.permute.xlu0 %1576
        %v1578 = vrot.slane %v1571, 4
        %v1579 = vrot.slane %v1573, 4
        %v1580 = vrot.slane %v1575, 4
        %v1581 = vrot.slane %v1577, 4
        %v1582 = vsel %vm550, %v1578, %v1571
        %v1583 = vsel %vm550, %v1579, %v1573
        %v1584 = vsel %vm550, %v1580, %v1575
        %v1585 = vsel %vm550, %v1581, %v1577
        %1594 = vst.msk [vmem:[#allocation3] sm:$0xff] %vm565, %v1582
        %1595 = vst.msk [vmem:[#allocation3 + $0x8] sm:$0xf] %vm436, %v1578
        %1596 = vst.msk [vmem:[#allocation3 + $0xc] sm:$0xff] %vm565, %v1583
        %1597 = vst.msk [vmem:[#allocation3 + $0x14] sm:$0xf] %vm436, %v1579
        %1598 = vst.msk [vmem:[#allocation3 + $0x18] sm:$0xff] %vm565, %v1584
        %1599 = vst.msk [vmem:[#allocation3 + $0x20] sm:$0xf] %vm436, %v1580
        %1600 = vst.msk [vmem:[#allocation3 + $0x24] sm:$0xff] %vm565, %v1585
        %1601 = vst.msk [vmem:[#allocation3 + $0x2c] sm:$0xf] %vm436, %v1581
        %v1602 = vld [vmem:[#allocation3] sm:$0xff]
        %v1603 = vld [vmem:[#allocation3 + $0xc] sm:$0xff]
        %v1604 = vld [vmem:[#allocation3 + $0x18] sm:$0xff]
        %v1605 = vld [vmem:[#allocation3 + $0x24] sm:$0xff]
        %v1606 = vsel %vm584, %v1602, 0
        %v1607 = vsel %vm584, %v1603, 0
        %v1608 = vsel %vm584, %v1604, 0
        %v1609 = vsel %vm584, %v1605, 0
        %1610 = vst [vmem:[#allocation2] sm:$0xff] %v1606
        %1611 = vst [vmem:[#allocation2 + $0x8] sm:$0xff] %v1607
        %1612 = vst [vmem:[#allocation2 + $0x10] sm:$0xff] %v1608
        %1613 = vst [vmem:[#allocation2 + $0x18] sm:$0xff] %v1609
        %v1614 = vld [vmem:[#allocation3] sm:$0xff]
        %v1615 = vld [vmem:[#allocation3 + $0x8] sm:$0xf]
        %v1616 = vld [vmem:[#allocation3 + $0xc] sm:$0xff]
        %v1617 = vld [vmem:[#allocation3 + $0x14] sm:$0xf]
        %v1618 = vld [vmem:[#allocation3 + $0x18] sm:$0xff]
        %v1619 = vld [vmem:[#allocation3 + $0x20] sm:$0xf]
        %v1620 = vld [vmem:[#allocation3 + $0x24] sm:$0xff]
        %v1621 = vld [vmem:[#allocation3 + $0x2c] sm:$0xf]
        %1630 = vrot.lane.b32.xlu0 %v1614, 127
        %v1631 = vpop.permute.xlu0 %1630
        %1632 = vrot.lane.b32.xlu0 %v1615, 127
        %v1633 = vpop.permute.xlu0 %1632
        %1634 = vrot.lane.b32.xlu0 %v1616, 127
        %v1635 = vpop.permute.xlu0 %1634
        %1636 = vrot.lane.b32.xlu0 %v1617, 127
        %v1637 = vpop.permute.xlu0 %1636
        %1638 = vrot.lane.b32.xlu0 %v1618, 127
        %v1639 = vpop.permute.xlu0 %1638
        %1640 = vrot.lane.b32.xlu0 %v1619, 127
        %v1641 = vpop.permute.xlu0 %1640
        %1642 = vrot.lane.b32.xlu0 %v1620, 127
        %v1643 = vpop.permute.xlu0 %1642
        %1644 = vrot.lane.b32.xlu0 %v1621, 127
        %v1645 = vpop.permute.xlu0 %1644
        %v1646 = vrot.slane %v1631, 4
        %v1647 = vrot.slane %v1633, 4
        %v1648 = vrot.slane %v1635, 4
        %v1649 = vrot.slane %v1637, 4
        %v1650 = vrot.slane %v1639, 4
        %v1651 = vrot.slane %v1641, 4
        %v1652 = vrot.slane %v1643, 4
        %v1653 = vrot.slane %v1645, 4
        %v1654 = vsel %vm633, %v1646, %v1647
        %v1655 = vsel %vm635, %v1631, %v1654
        %v1656 = vsel %vm633, %v1648, %v1649
        %v1657 = vsel %vm635, %v1635, %v1656
        %v1658 = vsel %vm633, %v1650, %v1651
        %v1659 = vsel %vm635, %v1639, %v1658
        %v1660 = vsel %vm633, %v1652, %v1653
        %v1661 = vsel %vm635, %v1643, %v1660
        %1666 = vst [vmem:[#allocation2 + $0x20] sm:$0xff] %v1655
        %1667 = vst [vmem:[#allocation2 + $0x28] sm:$0xff] %v1657
        %1668 = vst [vmem:[#allocation2 + $0x30] sm:$0xff] %v1659
        %1669 = vst [vmem:[#allocation2 + $0x38] sm:$0xff] %v1661
        %v1670 = vld [vmem:[#allocation3] sm:$0xff]
        %v1671 = vld [vmem:[#allocation3 + $0x8] sm:$0xf]
        %v1672 = vld [vmem:[#allocation3 + $0xc] sm:$0xff]
        %v1673 = vld [vmem:[#allocation3 + $0x14] sm:$0xf]
        %v1674 = vld [vmem:[#allocation3 + $0x18] sm:$0xff]
        %v1675 = vld [vmem:[#allocation3 + $0x20] sm:$0xf]
        %v1676 = vld [vmem:[#allocation3 + $0x24] sm:$0xff]
        %v1677 = vld [vmem:[#allocation3 + $0x2c] sm:$0xf]
        %v1678 = vsel %vm672, %v1670, 0
        %v1679 = vsel %vm673, %v1671, 0
        %v1680 = vsel %vm672, %v1672, 0
        %v1681 = vsel %vm673, %v1673, 0
        %v1682 = vsel %vm672, %v1674, 0
        %v1683 = vsel %vm673, %v1675, 0
        %v1684 = vsel %vm672, %v1676, 0
        %v1685 = vsel %vm673, %v1677, 0
        %1694 = vrot.lane.b32.xlu0 %v1678, 126
        %v1695 = vpop.permute.xlu0 %1694
        %1696 = vrot.lane.b32.xlu0 %v1679, 126
        %v1697 = vpop.permute.xlu0 %1696
        %1698 = vrot.lane.b32.xlu0 %v1680, 126
        %v1699 = vpop.permute.xlu0 %1698
        %1700 = vrot.lane.b32.xlu0 %v1681, 126
        %v1701 = vpop.permute.xlu0 %1700
        %1702 = vrot.lane.b32.xlu0 %v1682, 126
        %v1703 = vpop.permute.xlu0 %1702
        %1704 = vrot.lane.b32.xlu0 %v1683, 126
        %v1705 = vpop.permute.xlu0 %1704
        %1706 = vrot.lane.b32.xlu0 %v1684, 126
        %v1707 = vpop.permute.xlu0 %1706
        %1708 = vrot.lane.b32.xlu0 %v1685, 126
        %v1709 = vpop.permute.xlu0 %1708
        %v1710 = vrot.slane %v1695, 4
        %v1711 = vrot.slane %v1697, 4
        %v1712 = vrot.slane %v1699, 4
        %v1713 = vrot.slane %v1701, 4
        %v1714 = vrot.slane %v1703, 4
        %v1715 = vrot.slane %v1705, 4
        %v1716 = vrot.slane %v1707, 4
        %v1717 = vrot.slane %v1709, 4
        %v1718 = vsel %vm633, %v1710, %v1711
        %v1719 = vsel %vm715, %v1695, %v1718
        %v1720 = vsel %vm633, %v1712, %v1713
        %v1721 = vsel %vm715, %v1699, %v1720
        %v1722 = vsel %vm633, %v1714, %v1715
        %v1723 = vsel %vm715, %v1703, %v1722
        %v1724 = vsel %vm633, %v1716, %v1717
        %v1725 = vsel %vm715, %v1707, %v1724
        %1730 = vst [vmem:[#allocation2 + $0x40] sm:$0xff] %v1719
        %1731 = vst [vmem:[#allocation2 + $0x48] sm:$0xff] %v1721
        %1732 = vst [vmem:[#allocation2 + $0x50] sm:$0xff] %v1723
        %1733 = vst [vmem:[#allocation2 + $0x58] sm:$0xff] %v1725
        %v1734 = vld [vmem:[#allocation3] sm:$0xff]
        %v1735 = vld [vmem:[#allocation3 + $0x8] sm:$0xf]
        %v1736 = vld [vmem:[#allocation3 + $0xc] sm:$0xff]
        %v1737 = vld [vmem:[#allocation3 + $0x14] sm:$0xf]
        %v1738 = vld [vmem:[#allocation3 + $0x18] sm:$0xff]
        %v1739 = vld [vmem:[#allocation3 + $0x20] sm:$0xf]
        %v1740 = vld [vmem:[#allocation3 + $0x24] sm:$0xff]
        %v1741 = vld [vmem:[#allocation3 + $0x2c] sm:$0xf]
        %v1742 = vsel %vm745, %v1734, 0
        %v1743 = vsel %vm746, %v1735, 0
        %v1744 = vsel %vm745, %v1736, 0
        %v1745 = vsel %vm746, %v1737, 0
        %v1746 = vsel %vm745, %v1738, 0
        %v1747 = vsel %vm746, %v1739, 0
        %v1748 = vsel %vm745, %v1740, 0
        %v1749 = vsel %vm746, %v1741, 0
        %1758 = vrot.lane.b32.xlu0 %v1742, 112
        %v1759 = vpop.permute.xlu0 %1758
        %1760 = vrot.lane.b32.xlu0 %v1743, 112
        %v1761 = vpop.permute.xlu0 %1760
        %1762 = vrot.lane.b32.xlu0 %v1744, 112
        %v1763 = vpop.permute.xlu0 %1762
        %1764 = vrot.lane.b32.xlu0 %v1745, 112
        %v1765 = vpop.permute.xlu0 %1764
        %1766 = vrot.lane.b32.xlu0 %v1746, 112
        %v1767 = vpop.permute.xlu0 %1766
        %1768 = vrot.lane.b32.xlu0 %v1747, 112
        %v1769 = vpop.permute.xlu0 %1768
        %1770 = vrot.lane.b32.xlu0 %v1748, 112
        %v1771 = vpop.permute.xlu0 %1770
        %1772 = vrot.lane.b32.xlu0 %v1749, 112
        %v1773 = vpop.permute.xlu0 %1772
        %v1774 = vrot.slane %v1759, 4
        %v1775 = vrot.slane %v1761, 4
        %v1776 = vrot.slane %v1763, 4
        %v1777 = vrot.slane %v1765, 4
        %v1778 = vrot.slane %v1767, 4
        %v1779 = vrot.slane %v1769, 4
        %v1780 = vrot.slane %v1771, 4
        %v1781 = vrot.slane %v1773, 4
        %v1782 = vsel %vm633, %v1774, %v1775
        %v1783 = vsel %vm788, %v1759, %v1782
        %v1784 = vsel %vm633, %v1776, %v1777
        %v1785 = vsel %vm788, %v1763, %v1784
        %v1786 = vsel %vm633, %v1778, %v1779
        %v1787 = vsel %vm788, %v1767, %v1786
        %v1788 = vsel %vm633, %v1780, %v1781
        %v1789 = vsel %vm788, %v1771, %v1788
        %1794 = vst [vmem:[#allocation2 + $0x60] sm:$0xff] %v1783
        %1795 = vst [vmem:[#allocation2 + $0x68] sm:$0xff] %v1785
        %1796 = vst [vmem:[#allocation2 + $0x70] sm:$0xff] %v1787
        %1797 = vst [vmem:[#allocation2 + $0x78] sm:$0xff] %v1789
        %v1798 = vld [vmem:[#allocation3] sm:$0xff]
        %v1799 = vld [vmem:[#allocation3 + $0x8] sm:$0xf]
        %v1800 = vld [vmem:[#allocation3 + $0xc] sm:$0xff]
        %v1801 = vld [vmem:[#allocation3 + $0x14] sm:$0xf]
        %v1802 = vld [vmem:[#allocation3 + $0x18] sm:$0xff]
        %v1803 = vld [vmem:[#allocation3 + $0x20] sm:$0xf]
        %v1804 = vld [vmem:[#allocation3 + $0x24] sm:$0xff]
        %v1805 = vld [vmem:[#allocation3 + $0x2c] sm:$0xf]
        %1814 = vrot.lane.b32.xlu0 %v1798, 111
        %v1815 = vpop.permute.xlu0 %1814
        %1816 = vrot.lane.b32.xlu0 %v1799, 111
        %v1817 = vpop.permute.xlu0 %1816
        %1818 = vrot.lane.b32.xlu0 %v1800, 111
        %v1819 = vpop.permute.xlu0 %1818
        %1820 = vrot.lane.b32.xlu0 %v1801, 111
        %v1821 = vpop.permute.xlu0 %1820
        %1822 = vrot.lane.b32.xlu0 %v1802, 111
        %v1823 = vpop.permute.xlu0 %1822
        %1824 = vrot.lane.b32.xlu0 %v1803, 111
        %v1825 = vpop.permute.xlu0 %1824
        %1826 = vrot.lane.b32.xlu0 %v1804, 111
        %v1827 = vpop.permute.xlu0 %1826
        %1828 = vrot.lane.b32.xlu0 %v1805, 111
        %v1829 = vpop.permute.xlu0 %1828
        %v1830 = vrot.slane %v1815, 4
        %v1831 = vrot.slane %v1817, 4
        %v1832 = vrot.slane %v1819, 4
        %v1833 = vrot.slane %v1821, 4
        %v1834 = vrot.slane %v1823, 4
        %v1835 = vrot.slane %v1825, 4
        %v1836 = vrot.slane %v1827, 4
        %v1837 = vrot.slane %v1829, 4
        %v1838 = vsel %vm633, %v1830, %v1831
        %v1839 = vsel %vm845, %v1815, %v1838
        %v1840 = vsel %vm633, %v1832, %v1833
        %v1841 = vsel %vm845, %v1819, %v1840
        %v1842 = vsel %vm633, %v1834, %v1835
        %v1843 = vsel %vm845, %v1823, %v1842
        %v1844 = vsel %vm633, %v1836, %v1837
        %v1845 = vsel %vm845, %v1827, %v1844
        %1850 = vst [vmem:[#allocation2 + $0x80] sm:$0xff] %v1839
        %1851 = vst [vmem:[#allocation2 + $0x88] sm:$0xff] %v1841
        %1852 = vst [vmem:[#allocation2 + $0x90] sm:$0xff] %v1843
        %1853 = vst [vmem:[#allocation2 + $0x98] sm:$0xff] %v1845
        %v1854 = vld [vmem:[#allocation3] sm:$0xff]
        %v1855 = vld [vmem:[#allocation3 + $0x8] sm:$0xf]
        %v1856 = vld [vmem:[#allocation3 + $0xc] sm:$0xff]
        %v1857 = vld [vmem:[#allocation3 + $0x14] sm:$0xf]
        %v1858 = vld [vmem:[#allocation3 + $0x18] sm:$0xff]
        %v1859 = vld [vmem:[#allocation3 + $0x20] sm:$0xf]
        %v1860 = vld [vmem:[#allocation3 + $0x24] sm:$0xff]
        %v1861 = vld [vmem:[#allocation3 + $0x2c] sm:$0xf]
        %v1862 = vsel %vm874, %v1854, 0
        %v1863 = vsel %vm875, %v1855, 0
        %v1864 = vsel %vm874, %v1856, 0
        %v1865 = vsel %vm875, %v1857, 0
        %v1866 = vsel %vm874, %v1858, 0
        %v1867 = vsel %vm875, %v1859, 0
        %v1868 = vsel %vm874, %v1860, 0
        %v1869 = vsel %vm875, %v1861, 0
        %1878 = vrot.lane.b32.xlu0 %v1862, 110
        %v1879 = vpop.permute.xlu0 %1878
        %1880 = vrot.lane.b32.xlu0 %v1863, 110
        %v1881 = vpop.permute.xlu0 %1880
        %1882 = vrot.lane.b32.xlu0 %v1864, 110
        %v1883 = vpop.permute.xlu0 %1882
        %1884 = vrot.lane.b32.xlu0 %v1865, 110
        %v1885 = vpop.permute.xlu0 %1884
        %1886 = vrot.lane.b32.xlu0 %v1866, 110
        %v1887 = vpop.permute.xlu0 %1886
        %1888 = vrot.lane.b32.xlu0 %v1867, 110
        %v1889 = vpop.permute.xlu0 %1888
        %1890 = vrot.lane.b32.xlu0 %v1868, 110
        %v1891 = vpop.permute.xlu0 %1890
        %1892 = vrot.lane.b32.xlu0 %v1869, 110
        %v1893 = vpop.permute.xlu0 %1892
        %v1894 = vrot.slane %v1879, 4
        %v1895 = vrot.slane %v1881, 4
        %v1896 = vrot.slane %v1883, 4
        %v1897 = vrot.slane %v1885, 4
        %v1898 = vrot.slane %v1887, 4
        %v1899 = vrot.slane %v1889, 4
        %v1900 = vrot.slane %v1891, 4
        %v1901 = vrot.slane %v1893, 4
        %v1902 = vsel %vm633, %v1894, %v1895
        %v1903 = vsel %vm917, %v1879, %v1902
        %v1904 = vsel %vm633, %v1896, %v1897
        %v1905 = vsel %vm917, %v1883, %v1904
        %v1906 = vsel %vm633, %v1898, %v1899
        %v1907 = vsel %vm917, %v1887, %v1906
        %v1908 = vsel %vm633, %v1900, %v1901
        %v1909 = vsel %vm917, %v1891, %v1908
        %1914 = vst [vmem:[#allocation2 + $0xa0] sm:$0xff] %v1903
        %1915 = vst [vmem:[#allocation2 + $0xa8] sm:$0xff] %v1905
        %1916 = vst [vmem:[#allocation2 + $0xb0] sm:$0xff] %v1907
        %1917 = vst [vmem:[#allocation2 + $0xb8] sm:$0xff] %v1909
        %v1918 = vld [vmem:[#allocation3] sm:$0xff]
        %v1919 = vld [vmem:[#allocation3 + $0x8] sm:$0xf]
        %v1920 = vld [vmem:[#allocation3 + $0xc] sm:$0xff]
        %v1921 = vld [vmem:[#allocation3 + $0x14] sm:$0xf]
        %v1922 = vld [vmem:[#allocation3 + $0x18] sm:$0xff]
        %v1923 = vld [vmem:[#allocation3 + $0x20] sm:$0xf]
        %v1924 = vld [vmem:[#allocation3 + $0x24] sm:$0xff]
        %v1925 = vld [vmem:[#allocation3 + $0x2c] sm:$0xf]
        %v1926 = vsel %vm946, %v1918, 0
        %v1927 = vsel %vm947, %v1919, 0
        %v1928 = vsel %vm946, %v1920, 0
        %v1929 = vsel %vm947, %v1921, 0
        %v1930 = vsel %vm946, %v1922, 0
        %v1931 = vsel %vm947, %v1923, 0
        %v1932 = vsel %vm946, %v1924, 0
        %v1933 = vsel %vm947, %v1925, 0
        %1942 = vrot.lane.b32.xlu0 %v1926, 96
        %v1943 = vpop.permute.xlu0 %1942
        %1944 = vrot.lane.b32.xlu0 %v1927, 96
        %v1945 = vpop.permute.xlu0 %1944
        %1946 = vrot.lane.b32.xlu0 %v1928, 96
        %v1947 = vpop.permute.xlu0 %1946
        %1948 = vrot.lane.b32.xlu0 %v1929, 96
        %v1949 = vpop.permute.xlu0 %1948
        %1950 = vrot.lane.b32.xlu0 %v1930, 96
        %v1951 = vpop.permute.xlu0 %1950
        %1952 = vrot.lane.b32.xlu0 %v1931, 96
        %v1953 = vpop.permute.xlu0 %1952
        %1954 = vrot.lane.b32.xlu0 %v1932, 96
        %v1955 = vpop.permute.xlu0 %1954
        %1956 = vrot.lane.b32.xlu0 %v1933, 96
        %v1957 = vpop.permute.xlu0 %1956
        %v1958 = vrot.slane %v1943, 4
        %v1959 = vrot.slane %v1945, 4
        %v1960 = vrot.slane %v1947, 4
        %v1961 = vrot.slane %v1949, 4
        %v1962 = vrot.slane %v1951, 4
        %v1963 = vrot.slane %v1953, 4
        %v1964 = vrot.slane %v1955, 4
        %v1965 = vrot.slane %v1957, 4
        %v1966 = vsel %vm633, %v1958, %v1959
        %v1967 = vsel %vm989, %v1943, %v1966
        %v1968 = vsel %vm633, %v1960, %v1961
        %v1969 = vsel %vm989, %v1947, %v1968
        %v1970 = vsel %vm633, %v1962, %v1963
        %v1971 = vsel %vm989, %v1951, %v1970
        %v1972 = vsel %vm633, %v1964, %v1965
        %v1973 = vsel %vm989, %v1955, %v1972
        %1978 = vst [vmem:[#allocation2 + $0xc0] sm:$0xff] %v1967
        %1979 = vst [vmem:[#allocation2 + $0xc8] sm:$0xff] %v1969
        %1980 = vst [vmem:[#allocation2 + $0xd0] sm:$0xff] %v1971
        %1981 = vst [vmem:[#allocation2 + $0xd8] sm:$0xff] %v1973
        %v1982 = vld [vmem:[#allocation3] sm:$0xff]
        %v1983 = vld [vmem:[#allocation3 + $0x8] sm:$0xf]
        %v1984 = vld [vmem:[#allocation3 + $0xc] sm:$0xff]
        %v1985 = vld [vmem:[#allocation3 + $0x14] sm:$0xf]
        %v1986 = vld [vmem:[#allocation3 + $0x18] sm:$0xff]
        %v1987 = vld [vmem:[#allocation3 + $0x20] sm:$0xf]
        %v1988 = vld [vmem:[#allocation3 + $0x24] sm:$0xff]
        %v1989 = vld [vmem:[#allocation3 + $0x2c] sm:$0xf]
        %1998 = vrot.lane.b32.xlu0 %v1982, 95
        %v1999 = vpop.permute.xlu0 %1998
        %2000 = vrot.lane.b32.xlu0 %v1983, 95
        %v2001 = vpop.permute.xlu0 %2000
        %2002 = vrot.lane.b32.xlu0 %v1984, 95
        %v2003 = vpop.permute.xlu0 %2002
        %2004 = vrot.lane.b32.xlu0 %v1985, 95
        %v2005 = vpop.permute.xlu0 %2004
        %2006 = vrot.lane.b32.xlu0 %v1986, 95
        %v2007 = vpop.permute.xlu0 %2006
        %2008 = vrot.lane.b32.xlu0 %v1987, 95
        %v2009 = vpop.permute.xlu0 %2008
        %2010 = vrot.lane.b32.xlu0 %v1988, 95
        %v2011 = vpop.permute.xlu0 %2010
        %2012 = vrot.lane.b32.xlu0 %v1989, 95
        %v2013 = vpop.permute.xlu0 %2012
        %v2014 = vrot.slane %v1999, 4
        %v2015 = vrot.slane %v2001, 4
        %v2016 = vrot.slane %v2003, 4
        %v2017 = vrot.slane %v2005, 4
        %v2018 = vrot.slane %v2007, 4
        %v2019 = vrot.slane %v2009, 4
        %v2020 = vrot.slane %v2011, 4
        %v2021 = vrot.slane %v2013, 4
        %v2022 = vsel %vm633, %v2014, %v2015
        %v2023 = vsel %vm1046, %v1999, %v2022
        %v2024 = vsel %vm633, %v2016, %v2017
        %v2025 = vsel %vm1046, %v2003, %v2024
        %v2026 = vsel %vm633, %v2018, %v2019
        %v2027 = vsel %vm1046, %v2007, %v2026
        %v2028 = vsel %vm633, %v2020, %v2021
        %v2029 = vsel %vm1046, %v2011, %v2028
        %2034 = vst [vmem:[#allocation2 + $0xe0] sm:$0xff] %v2023
        %2035 = vst [vmem:[#allocation2 + $0xe8] sm:$0xff] %v2025
        %2036 = vst [vmem:[#allocation2 + $0xf0] sm:$0xff] %v2027
        %2037 = vst [vmem:[#allocation2 + $0xf8] sm:$0xff] %v2029
        %v2038 = vld [vmem:[#allocation3] sm:$0xff]
        %v2039 = vld [vmem:[#allocation3 + $0x8] sm:$0xf]
        %v2040 = vld [vmem:[#allocation3 + $0xc] sm:$0xff]
        %v2041 = vld [vmem:[#allocation3 + $0x14] sm:$0xf]
        %v2042 = vld [vmem:[#allocation3 + $0x18] sm:$0xff]
        %v2043 = vld [vmem:[#allocation3 + $0x20] sm:$0xf]
        %v2044 = vld [vmem:[#allocation3 + $0x24] sm:$0xff]
        %v2045 = vld [vmem:[#allocation3 + $0x2c] sm:$0xf]
        %v2046 = vsel %vm1075, %v2038, 0
        %v2047 = vsel %vm1076, %v2039, 0
        %v2048 = vsel %vm1075, %v2040, 0
        %v2049 = vsel %vm1076, %v2041, 0
        %v2050 = vsel %vm1075, %v2042, 0
        %v2051 = vsel %vm1076, %v2043, 0
        %v2052 = vsel %vm1075, %v2044, 0
        %v2053 = vsel %vm1076, %v2045, 0
        %2062 = vrot.lane.b32.xlu0 %v2046, 94
        %v2063 = vpop.permute.xlu0 %2062
        %2064 = vrot.lane.b32.xlu0 %v2047, 94
        %v2065 = vpop.permute.xlu0 %2064
        %2066 = vrot.lane.b32.xlu0 %v2048, 94
        %v2067 = vpop.permute.xlu0 %2066
        %2068 = vrot.lane.b32.xlu0 %v2049, 94
        %v2069 = vpop.permute.xlu0 %2068
        %2070 = vrot.lane.b32.xlu0 %v2050, 94
        %v2071 = vpop.permute.xlu0 %2070
        %2072 = vrot.lane.b32.xlu0 %v2051, 94
        %v2073 = vpop.permute.xlu0 %2072
        %2074 = vrot.lane.b32.xlu0 %v2052, 94
        %v2075 = vpop.permute.xlu0 %2074
        %2076 = vrot.lane.b32.xlu0 %v2053, 94
        %v2077 = vpop.permute.xlu0 %2076
        %v2078 = vrot.slane %v2063, 4
        %v2079 = vrot.slane %v2065, 4
        %v2080 = vrot.slane %v2067, 4
        %v2081 = vrot.slane %v2069, 4
        %v2082 = vrot.slane %v2071, 4
        %v2083 = vrot.slane %v2073, 4
        %v2084 = vrot.slane %v2075, 4
        %v2085 = vrot.slane %v2077, 4
        %v2086 = vsel %vm633, %v2078, %v2079
        %v2087 = vsel %vm1118, %v2063, %v2086
        %v2088 = vsel %vm633, %v2080, %v2081
        %v2089 = vsel %vm1118, %v2067, %v2088
        %v2090 = vsel %vm633, %v2082, %v2083
        %v2091 = vsel %vm1118, %v2071, %v2090
        %v2092 = vsel %vm633, %v2084, %v2085
        %v2093 = vsel %vm1118, %v2075, %v2092
        %2098 = vst [vmem:[#allocation2 + $0x100] sm:$0xff] %v2087
        %2099 = vst [vmem:[#allocation2 + $0x108] sm:$0xff] %v2089
        %2100 = vst [vmem:[#allocation2 + $0x110] sm:$0xff] %v2091
        %2101 = vst [vmem:[#allocation2 + $0x118] sm:$0xff] %v2093
        %v2102 = vld [vmem:[%s5] sm:$0xff]
        %v2103 = vld [vmem:[%s5 + $0x8] sm:$0xf]
        %v2104 = vld [vmem:[%s5 + $0xc] sm:$0xff]
        %v2105 = vld [vmem:[%s5 + $0x14] sm:$0xf]
        %v2106 = vld [vmem:[%s5 + $0x18] sm:$0xff]
        %v2107 = vld [vmem:[%s5 + $0x20] sm:$0xf]
        %v2108 = vld [vmem:[%s5 + $0x24] sm:$0xff]
        %v2109 = vld [vmem:[%s5 + $0x2c] sm:$0xf]
        %v2110 = vld [vmem:[#allocation2] sm:$0xff]
        %v2111 = vld [vmem:[#allocation2 + $0x8] sm:$0xff]
        %v2112 = vld [vmem:[#allocation2 + $0x10] sm:$0xff]
        %v2113 = vld [vmem:[#allocation2 + $0x18] sm:$0xff]
        %v2114 = vld [vmem:[#allocation2 + $0x20] sm:$0xff]
        %v2115 = vld [vmem:[#allocation2 + $0x28] sm:$0xff]
        %v2116 = vld [vmem:[#allocation2 + $0x30] sm:$0xff]
        %v2117 = vld [vmem:[#allocation2 + $0x38] sm:$0xff]
        %v2118 = vld [vmem:[#allocation2 + $0x40] sm:$0xff]
        %v2119 = vld [vmem:[#allocation2 + $0x48] sm:$0xff]
        %v2120 = vld [vmem:[#allocation2 + $0x50] sm:$0xff]
        %v2121 = vld [vmem:[#allocation2 + $0x58] sm:$0xff]
        %v2122 = vld [vmem:[#allocation2 + $0x60] sm:$0xff]
        %v2123 = vld [vmem:[#allocation2 + $0x68] sm:$0xff]
        %v2124 = vld [vmem:[#allocation2 + $0x70] sm:$0xff]
        %v2125 = vld [vmem:[#allocation2 + $0x78] sm:$0xff]
        %v2126 = vld [vmem:[#allocation2 + $0x80] sm:$0xff]
        %v2127 = vld [vmem:[#allocation2 + $0x88] sm:$0xff]
        %v2128 = vld [vmem:[#allocation2 + $0x90] sm:$0xff]
        %v2129 = vld [vmem:[#allocation2 + $0x98] sm:$0xff]
        %v2130 = vld [vmem:[#allocation2 + $0xa0] sm:$0xff]
        %v2131 = vld [vmem:[#allocation2 + $0xa8] sm:$0xff]
        %v2132 = vld [vmem:[#allocation2 + $0xb0] sm:$0xff]
        %v2133 = vld [vmem:[#allocation2 + $0xb8] sm:$0xff]
        %v2134 = vld [vmem:[#allocation2 + $0xc0] sm:$0xff]
        %v2135 = vld [vmem:[#allocation2 + $0xc8] sm:$0xff]
        %v2136 = vld [vmem:[#allocation2 + $0xd0] sm:$0xff]
        %v2137 = vld [vmem:[#allocation2 + $0xd8] sm:$0xff]
        %v2138 = vld [vmem:[#allocation2 + $0xe0] sm:$0xff]
        %v2139 = vld [vmem:[#allocation2 + $0xe8] sm:$0xff]
        %v2140 = vld [vmem:[#allocation2 + $0xf0] sm:$0xff]
        %v2141 = vld [vmem:[#allocation2 + $0xf8] sm:$0xff]
        %v2142 = vld [vmem:[#allocation2 + $0x100] sm:$0xff]
        %v2143 = vld [vmem:[#allocation2 + $0x108] sm:$0xff]
        %v2144 = vld [vmem:[#allocation2 + $0x110] sm:$0xff]
        %v2145 = vld [vmem:[#allocation2 + $0x118] sm:$0xff]
        %v2146 = vld [vmem:[%s6] sm:$0xff]
        %v2147 = vld [vmem:[%s6 + $0x8] sm:$0xff]
        %v2148 = vld [vmem:[%s6 + $0x10] sm:$0xff]
        %v2149 = vld [vmem:[%s6 + $0x18] sm:$0xff]
        %2151 = vset.pattern.permute.xlu0 0
        %2152 = vperm.xlu0 %2151, %v2146
        %v2153 = vpop.permute.xlu0 %2152
        %2156 = vset.pattern.permute.xlu0 0
        %2157 = vperm.xlu0 %2156, %v2147
        %v2158 = vpop.permute.xlu0 %2157
        %2161 = vset.pattern.permute.xlu0 0
        %2162 = vperm.xlu0 %2161, %v2148
        %v2163 = vpop.permute.xlu0 %2162
        %2166 = vset.pattern.permute.xlu0 0
        %2167 = vperm.xlu0 %2166, %v2149
        %v2168 = vpop.permute.xlu0 %2167
        %v2178 = vunpack.c.l.b16 %v2102
        %v2179 = vunpack.c.h.b16 %v2102
        %v2180 = vunpack.c.l.b16 %v2103
        %v2181 = vunpack.c.l.b16 %v2104
        %v2182 = vunpack.c.h.b16 %v2104
        %v2183 = vunpack.c.l.b16 %v2105
        %v2184 = vunpack.c.l.b16 %v2106
        %v2185 = vunpack.c.h.b16 %v2106
        %v2186 = vunpack.c.l.b16 %v2107
        %v2187 = vunpack.c.l.b16 %v2108
        %v2188 = vunpack.c.h.b16 %v2108
        %v2189 = vunpack.c.l.b16 %v2109
        %v2190 = vpack.c.b16 %v2181, %v2178
        %v2191 = vpack.c.b16 %v2182, %v2179
        %v2192 = vpack.c.b16 %v2183, %v2180
        %v2193 = vpack.c.b16 %v2187, %v2184
        %v2194 = vpack.c.b16 %v2188, %v2185
        %v2195 = vpack.c.b16 %v2189, %v2186
        %v2236 = vunpack.c.l.b16 %v2110
        %v2237 = vunpack.c.h.b16 %v2110
        %v2238 = vunpack.c.l.b16 %v2111
        %v2239 = vunpack.c.h.b16 %v2111
        %v2240 = vunpack.c.l.b16 %v2112
        %v2241 = vunpack.c.h.b16 %v2112
        %v2242 = vunpack.c.l.b16 %v2113
        %v2243 = vunpack.c.h.b16 %v2113
        %v2244 = vunpack.c.l.b16 %v2114
        %v2245 = vunpack.c.h.b16 %v2114
        %v2246 = vunpack.c.l.b16 %v2115
        %v2247 = vunpack.c.h.b16 %v2115
        %v2248 = vunpack.c.l.b16 %v2116
        %v2249 = vunpack.c.h.b16 %v2116
        %v2250 = vunpack.c.l.b16 %v2117
        %v2251 = vunpack.c.h.b16 %v2117
        %v2252 = vunpack.c.l.b16 %v2118
        %v2253 = vunpack.c.h.b16 %v2118
        %v2254 = vunpack.c.l.b16 %v2119
        %v2255 = vunpack.c.h.b16 %v2119
        %v2256 = vunpack.c.l.b16 %v2120
        %v2257 = vunpack.c.h.b16 %v2120
        %v2258 = vunpack.c.l.b16 %v2121
        %v2259 = vunpack.c.h.b16 %v2121
        %v2260 = vunpack.c.l.b16 %v2122
        %v2261 = vunpack.c.h.b16 %v2122
        %v2262 = vunpack.c.l.b16 %v2123
        %v2263 = vunpack.c.h.b16 %v2123
        %v2264 = vunpack.c.l.b16 %v2124
        %v2265 = vunpack.c.h.b16 %v2124
        %v2266 = vunpack.c.l.b16 %v2125
        %v2267 = vunpack.c.h.b16 %v2125
        %v2268 = vunpack.c.l.b16 %v2126
        %v2269 = vunpack.c.h.b16 %v2126
        %v2270 = vunpack.c.l.b16 %v2127
        %v2271 = vunpack.c.h.b16 %v2127
        %v2272 = vunpack.c.l.b16 %v2128
        %v2273 = vunpack.c.h.b16 %v2128
        %v2274 = vunpack.c.l.b16 %v2129
        %v2275 = vunpack.c.h.b16 %v2129
        %v2276 = vunpack.c.l.b16 %v2130
        %v2277 = vunpack.c.h.b16 %v2130
        %v2278 = vunpack.c.l.b16 %v2131
        %v2279 = vunpack.c.h.b16 %v2131
        %v2280 = vunpack.c.l.b16 %v2132
        %v2281 = vunpack.c.h.b16 %v2132
        %v2282 = vunpack.c.l.b16 %v2133
        %v2283 = vunpack.c.h.b16 %v2133
        %v2284 = vunpack.c.l.b16 %v2134
        %v2285 = vunpack.c.h.b16 %v2134
        %v2286 = vunpack.c.l.b16 %v2135
        %v2287 = vunpack.c.h.b16 %v2135
        %v2288 = vunpack.c.l.b16 %v2136
        %v2289 = vunpack.c.h.b16 %v2136
        %v2290 = vunpack.c.l.b16 %v2137
        %v2291 = vunpack.c.h.b16 %v2137
        %v2292 = vunpack.c.l.b16 %v2138
        %v2293 = vunpack.c.h.b16 %v2138
        %v2294 = vunpack.c.l.b16 %v2139
        %v2295 = vunpack.c.h.b16 %v2139
        %v2296 = vunpack.c.l.b16 %v2140
        %v2297 = vunpack.c.h.b16 %v2140
        %v2298 = vunpack.c.l.b16 %v2141
        %v2299 = vunpack.c.h.b16 %v2141
        %v2300 = vunpack.c.l.b16 %v2142
        %v2301 = vunpack.c.h.b16 %v2142
        %v2302 = vunpack.c.l.b16 %v2143
        %v2303 = vunpack.c.h.b16 %v2143
        %v2304 = vunpack.c.l.b16 %v2144
        %v2305 = vunpack.c.h.b16 %v2144
        %v2306 = vunpack.c.l.b16 %v2145
        %v2307 = vunpack.c.h.b16 %v2145
        %v2308 = vpack.c.b16 %v2238, %v2236
        %v2309 = vpack.c.b16 %v2239, %v2237
        %v2310 = vpack.c.b16 %v2242, %v2240
        %v2311 = vpack.c.b16 %v2243, %v2241
        %v2312 = vpack.c.b16 %v2246, %v2244
        %v2313 = vpack.c.b16 %v2247, %v2245
        %v2314 = vpack.c.b16 %v2250, %v2248
        %v2315 = vpack.c.b16 %v2251, %v2249
        %v2316 = vpack.c.b16 %v2254, %v2252
        %v2317 = vpack.c.b16 %v2255, %v2253
        %v2318 = vpack.c.b16 %v2258, %v2256
        %v2319 = vpack.c.b16 %v2259, %v2257
        %v2320 = vpack.c.b16 %v2262, %v2260
        %v2321 = vpack.c.b16 %v2263, %v2261
        %v2322 = vpack.c.b16 %v2266, %v2264
        %v2323 = vpack.c.b16 %v2267, %v2265
        %v2324 = vpack.c.b16 %v2270, %v2268
        %v2325 = vpack.c.b16 %v2271, %v2269
        %v2326 = vpack.c.b16 %v2274, %v2272
        %v2327 = vpack.c.b16 %v2275, %v2273
        %v2328 = vpack.c.b16 %v2278, %v2276
        %v2329 = vpack.c.b16 %v2279, %v2277
        %v2330 = vpack.c.b16 %v2282, %v2280
        %v2331 = vpack.c.b16 %v2283, %v2281
        %v2332 = vpack.c.b16 %v2286, %v2284
        %v2333 = vpack.c.b16 %v2287, %v2285
        %v2334 = vpack.c.b16 %v2290, %v2288
        %v2335 = vpack.c.b16 %v2291, %v2289
        %v2336 = vpack.c.b16 %v2294, %v2292
        %v2337 = vpack.c.b16 %v2295, %v2293
        %v2338 = vpack.c.b16 %v2298, %v2296
        %v2339 = vpack.c.b16 %v2299, %v2297
        %v2340 = vpack.c.b16 %v2302, %v2300
        %v2341 = vpack.c.b16 %v2303, %v2301
        %v2342 = vpack.c.b16 %v2306, %v2304
        %v2343 = vpack.c.b16 %v2307, %v2305
        %v2381 = vsel %vm1412, %v2192, 0
        %v2384 = vsel %vm1412, %v2195, 0
        %2386 = vmatprep.subr.bf16.mxu0 %v2323
        %2387 = vmatpush1.bf16.msra.mxu0 %v2322
        %2388 = vmatprep.subr.bf16.mxu0 %v2321
        %2389 = vmatpush1.bf16.msra.mxu0 %v2320
        %2390 = vmatprep.subr.bf16.mxu0 %v2319
        %2391 = vmatpush1.bf16.msra.mxu0 %v2318
        %2392 = vmatprep.subr.bf16.mxu0 %v2317
        %2393 = vmatpush1.bf16.msra.mxu0 %v2316
        %2394 = vmatprep.subr.bf16.mxu0 %v2315
        %2395 = vmatpush1.bf16.msra.mxu0 %v2314
        %2396 = vmatprep.subr.bf16.mxu0 %v2313
        %2397 = vmatpush1.bf16.msra.mxu0 %v2312
        %2398 = vmatprep.subr.bf16.mxu0 %v2311
        %2399 = vmatpush1.bf16.msra.mxu0 %v2310
        %2400 = vmatprep.subr.bf16.mxu0 %v2309
        %2401 = vmatpush1.bf16.msra.mxu0 %v2308
        %2402 = vmatprep.subr.bf16.mxu0 %v2339
        %2403 = vmatpush2.bf16.msra.mxu0 %v2338
        %2404 = vmatprep.subr.bf16.mxu0 %v2337
        %2405 = vmatpush2.bf16.msra.mxu0 %v2336
        %2406 = vmatprep.subr.bf16.mxu0 %v2335
        %2407 = vmatpush2.bf16.msra.mxu0 %v2334
        %2408 = vmatprep.subr.bf16.mxu0 %v2333
        %2409 = vmatpush2.bf16.msra.mxu0 %v2332
        %2410 = vmatprep.subr.bf16.mxu0 %v2331
        %2411 = vmatpush2.bf16.msra.mxu0 %v2330
        %2412 = vmatprep.subr.bf16.mxu0 %v2329
        %2413 = vmatpush2.bf16.msra.mxu0 %v2328
        %2414 = vmatprep.subr.bf16.mxu0 %v2327
        %2415 = vmatpush2.bf16.msra.mxu0 %v2326
        %2416 = vmatprep.subr.bf16.mxu0 %v2325
        %2417 = vmatpush2.bf16.msra.mxu0 %v2324
        %2418 = vmatprep.mubr.bf16.mxu0 %v2191
        %2419 = vmatmul.mubr.bf16.gmra.mxu0 %v2190
        %v2420 = vpop.f32.mrf.mxu0
        %v2421 = vadd.f32 %v2153, %v2420
        %v2422 = vpop.f32.mrf.mxu0
        %v2423 = vadd.f32 %v2153, %v2422
        %v2424 = vpop.f32.mrf.mxu0
        %v2425 = vadd.f32 %v2158, %v2424
        %v2426 = vpop.f32.mrf.mxu0
        %v2427 = vadd.f32 %v2158, %v2426
        %2428 = vmatprep.mubr.bf16.mxu0 %v2194
        %2429 = vmatmul.mubr.bf16.gmra.mxu0 %v2193
        %v2430 = vpop.f32.mrf.mxu0
        %v2431 = vadd.f32 %v2163, %v2430
        %v2432 = vpop.f32.mrf.mxu0
        %v2433 = vadd.f32 %v2163, %v2432
        %v2434 = vpop.f32.mrf.mxu0
        %v2435 = vadd.f32 %v2168, %v2434
        %v2436 = vpop.f32.mrf.mxu0
        %v2437 = vadd.f32 %v2168, %v2436
        %2438 = vdwg.mxu0
        %2439 = vmatprep.subr.bf16.mxu0 0
        %2440 = vmatpush1.bf16.msra.mxu0 0
        %2441 = vmatprep.subr.bf16.mxu0 0
        %2442 = vmatpush1.bf16.msra.mxu0 0
        %2443 = vmatprep.subr.bf16.mxu0 0
        %2444 = vmatpush1.bf16.msra.mxu0 0
        %2445 = vmatprep.subr.bf16.mxu0 0
        %2446 = vmatpush1.bf16.msra.mxu0 0
        %2447 = vmatprep.subr.bf16.mxu0 0
        %2448 = vmatpush1.bf16.msra.mxu0 0
        %2449 = vmatprep.subr.bf16.mxu0 0
        %2450 = vmatpush1.bf16.msra.mxu0 0
        %2451 = vmatprep.subr.bf16.mxu0 %v2343
        %2452 = vmatpush1.bf16.msra.mxu0 %v2342
        %2453 = vmatprep.subr.bf16.mxu0 %v2341
        %2454 = vmatpush1.bf16.msra.mxu0 %v2340
        %2455 = vmatprep.subr.bf16.mxu0 0
        %2456 = vmatpush2.bf16.msra.mxu0 0
        %2457 = vmatprep.subr.bf16.mxu0 0
        %2458 = vmatpush2.bf16.msra.mxu0 0
        %2459 = vmatprep.subr.bf16.mxu0 0
        %2460 = vmatpush2.bf16.msra.mxu0 0
        %2461 = vmatprep.subr.bf16.mxu0 0
        %2462 = vmatpush2.bf16.msra.mxu0 0
        %2463 = vmatprep.subr.bf16.mxu0 0
        %2464 = vmatpush2.bf16.msra.mxu0 0
        %2465 = vmatprep.subr.bf16.mxu0 0
        %2466 = vmatpush2.bf16.msra.mxu0 0
        %2467 = vmatprep.subr.bf16.mxu0 0
        %2468 = vmatpush2.bf16.msra.mxu0 0
        %2469 = vmatprep.subr.bf16.mxu0 0
        %2470 = vmatpush2.bf16.msra.mxu0 0
        %2471 = vmatprep.mubr.bf16.mxu0 0
        %2472 = vmatmul.mubr.bf16.gmra.mxu0 %v2381
        %v2473 = vpop.f32.mrf.mxu0
        %v2474 = vadd.f32 %v2421, %v2473
        %v2475 = vpop.f32.mrf.mxu0
        %v2476 = vadd.f32 %v2423, %v2475
        %v2477 = vpop.f32.mrf.mxu0
        %v2478 = vadd.f32 %v2425, %v2477
        %v2479 = vpop.f32.mrf.mxu0
        %v2480 = vadd.f32 %v2427, %v2479
        %2481 = vmatprep.mubr.bf16.mxu0 0
        %2482 = vmatmul.mubr.bf16.gmra.mxu0 %v2384
        %v2483 = vpop.f32.mrf.mxu0
        %v2484 = vadd.f32 %v2431, %v2483
        %v2485 = vpop.f32.mrf.mxu0
        %v2486 = vadd.f32 %v2433, %v2485
        %v2487 = vpop.f32.mrf.mxu0
        %v2488 = vadd.f32 %v2435, %v2487
        %v2489 = vpop.f32.mrf.mxu0
        %v2490 = vadd.f32 %v2437, %v2489
        %2491 = vdwg.mxu0
        %v2492 = vld [vmem:[%s7] sm:$0xff]
        %v2493 = vld [vmem:[%s7 + $0x8] sm:$0xff]
        %v2494 = vld [vmem:[%s7 + $0x10] sm:$0xff]
        %v2495 = vld [vmem:[%s7 + $0x18] sm:$0xff]
        %v2496 = vld [vmem:[%s8] sm:$0x1]
        %v2497 = vld [vmem:[%s9] sm:$0xff]
        %v2498 = vld [vmem:[%s9 + $0x8] sm:$0xff]
        %v2499 = vld [vmem:[%s9 + $0x10] sm:$0xff]
        %v2500 = vld [vmem:[%s9 + $0x18] sm:$0xff]
        %v2501 = vld [vmem:[%s10] sm:$0xff]
        %v2502 = vld [vmem:[%s10 + $0x8] sm:$0xff]
        %v2503 = vld [vmem:[%s10 + $0x10] sm:$0xff]
        %v2504 = vld [vmem:[%s10 + $0x18] sm:$0xff]
        %v2505 = vadd.f32 %v2474, %v2476
        %2506 = vadd.xlane.f32.xlu0 %v2505
        %v2507 = vpop.xlane.xlu0 %2506
        %v2508 = vadd.f32 %v2478, %v2480
        %2509 = vadd.xlane.f32.xlu0 %v2508
        %v2510 = vpop.xlane.xlu0 %2509
        %v2511 = vadd.f32 %v2484, %v2486
        %2512 = vadd.xlane.f32.xlu0 %v2511
        %v2513 = vpop.xlane.xlu0 %2512
        %v2514 = vadd.f32 %v2488, %v2490
        %2515 = vadd.xlane.f32.xlu0 %v2514
        %v2516 = vpop.xlane.xlu0 %2515
        %v2517 = vrcp.pop 256.0
        %v2518 = vmul.f32 %v2507, %v2517
        %v2519 = vmul.f32 %v2510, %v2517
        %v2520 = vmul.f32 %v2513, %v2517
        %v2521 = vmul.f32 %v2516, %v2517
        %v2522 = vmul.f32 %v2518, %v2492
        %v2523 = vmul.f32 %v2519, %v2493
        %v2524 = vmul.f32 %v2520, %v2494
        %v2525 = vmul.f32 %v2521, %v2495
        %vm2526 = vcmask 15360
        %v2527 = vsel %vm2526, %v2522, 0.0
        %v2528 = vsel %vm2526, %v2523, 0.0
        %v2529 = vadd.f32 %v2527, %v2528
        %v2530 = vsel %vm2526, %v2524, 0.0
        %v2531 = vadd.f32 %v2529, %v2530
        %v2532 = vsel %vm2526, %v2525, 0.0
        %v2533 = vadd.f32 %v2531, %v2532
        %v2534 = vrot.slane %v2533, 4
        %v2535 = vadd.f32 %v2533, %v2534
        %v2536 = vrot.slane %v2535, 2
        %v2537 = vadd.f32 %v2535, %v2536
        %v2538 = vrot.slane %v2537, 1
        %v2539 = vadd.f32 %v2537, %v2538
        %v2540 = vadd.f32 %v2539, %v2496
        %vm2541 = vcmp.ge.f32.partialorder %v2540, 0.0
        %v2542 = vstv %s430
        %v2543 = vmul.f32 %v2542, %v2540
        %v2544 = vsel %vm2541, %v2540, %v2543
        %v2545 = vlaneseq
        %v2546 = vshrl.u32 %v2545, 7
        %v2547 = vsub.s32 0, %v2546
        %v2548 = vrot.slane %v2544, %v2547
        %v2549 = vmul.f32 %v2548, %v2497
        %v2550 = vmul.f32 %v2548, %v2498
        %v2551 = vmul.f32 %v2548, %v2499
        %v2552 = vmul.f32 %v2548, %v2500
        %v2553 = vsel %vm2526, %v2549, 0.0
        %2554 = vadd.xlane.f32.xlu0 %v2553
        %v2555 = vpop.xlane.xlu0 %2554
        %v2556 = vsel %vm2526, %v2550, 0.0
        %2557 = vadd.xlane.f32.xlu0 %v2556
        %v2558 = vpop.xlane.xlu0 %2557
        %v2559 = vsel %vm2526, %v2551, 0.0
        %2560 = vadd.xlane.f32.xlu0 %v2559
        %v2561 = vpop.xlane.xlu0 %2560
        %v2562 = vsel %vm2526, %v2552, 0.0
        %2563 = vadd.xlane.f32.xlu0 %v2562
        %v2564 = vpop.xlane.xlu0 %2563
        %v2565 = vadd.f32 %v2555, %v2501
        %v2566 = vadd.f32 %v2558, %v2502
        %v2567 = vadd.f32 %v2561, %v2503
        %v2568 = vadd.f32 %v2564, %v2504
        %v2569 = vxor.u32 %v2565, 2147483648
        %v2570 = vxor.u32 %v2566, 2147483648
        %v2571 = vxor.u32 %v2567, 2147483648
        %v2572 = vxor.u32 %v2568, 2147483648
        %v2573 = vmul.f32 %v2569, 1.442695
        %v2574 = vpow.pop %v2573
        %v2575 = vmul.f32 %v2570, 1.442695
        %v2576 = vpow.pop %v2575
        %v2577 = vmul.f32 %v2571, 1.442695
        %v2578 = vpow.pop %v2577
        %v2579 = vmul.f32 %v2572, 1.442695
        %v2580 = vpow.pop %v2579
        %v2581 = vadd.f32 %v2574, 1.0
        %v2582 = vadd.f32 %v2576, 1.0
        %v2583 = vadd.f32 %v2578, 1.0
        %v2584 = vadd.f32 %v2580, 1.0
        %v2585 = vrcp.pop %v2581
        %v2586 = vmul.f32 1.0, %v2585
        %v2587 = vrcp.pop %v2582
        %v2588 = vmul.f32 1.0, %v2587
        %v2589 = vrcp.pop %v2583
        %v2590 = vmul.f32 1.0, %v2589
        %v2591 = vrcp.pop %v2584
        %v2592 = vmul.f32 1.0, %v2591
        %2594 = vset.pattern.permute.xlu0 0
        %2595 = vperm.xlu0 %2594, %v2586
        %v2596 = vpop.permute.xlu0 %2595
        %2599 = vset.pattern.permute.xlu0 0
        %2600 = vperm.xlu0 %2599, %v2588
        %v2601 = vpop.permute.xlu0 %2600
        %2604 = vset.pattern.permute.xlu0 0
        %2605 = vperm.xlu0 %2604, %v2590
        %v2606 = vpop.permute.xlu0 %2605
        %2609 = vset.pattern.permute.xlu0 0
        %2610 = vperm.xlu0 %2609, %v2592
        %v2611 = vpop.permute.xlu0 %2610
        %v2613 = vmul.f32 %v2474, %v2596
        %v2614 = vmul.f32 %v2476, %v2596
        %v2615 = vmul.f32 %v2478, %v2601
        %v2616 = vmul.f32 %v2480, %v2601
        %v2617 = vmul.f32 %v2484, %v2606
        %v2618 = vmul.f32 %v2486, %v2606
        %v2619 = vmul.f32 %v2488, %v2611
        %v2620 = vmul.f32 %v2490, %v2611
        %v2621 = vld [vmem:[%s425] sm:$0xff]
        %v2622 = vld [vmem:[%s425 + $0x8] sm:$0xff]
        %v2623 = vld [vmem:[%s425 + $0x10] sm:$0xff]
        %v2624 = vld [vmem:[%s425 + $0x18] sm:$0xff]
        %v2625 = vld [vmem:[%s425 + $0x20] sm:$0xff]
        %v2626 = vld [vmem:[%s425 + $0x28] sm:$0xff]
        %v2627 = vld [vmem:[%s425 + $0x30] sm:$0xff]
        %v2628 = vld [vmem:[%s425 + $0x38] sm:$0xff]
        %v2629 = vadd.f32 %v2613, %v2621
        %v2630 = vadd.f32 %v2614, %v2622
        %v2631 = vadd.f32 %v2615, %v2623
        %v2632 = vadd.f32 %v2616, %v2624
        %v2633 = vadd.f32 %v2617, %v2625
        %v2634 = vadd.f32 %v2618, %v2626
        %v2635 = vadd.f32 %v2619, %v2627
        %v2636 = vadd.f32 %v2620, %v2628
        %vm2637 = vcmp.ge.f32.partialorder %v2629, 0.0
        %vm2638 = vcmp.ge.f32.partialorder %v2630, 0.0
        %vm2639 = vcmp.ge.f32.partialorder %v2631, 0.0
        %vm2640 = vcmp.ge.f32.partialorder %v2632, 0.0
        %vm2641 = vcmp.ge.f32.partialorder %v2633, 0.0
        %vm2642 = vcmp.ge.f32.partialorder %v2634, 0.0
        %vm2643 = vcmp.ge.f32.partialorder %v2635, 0.0
        %vm2644 = vcmp.ge.f32.partialorder %v2636, 0.0
        %v2645 = vmul.f32 %v1533, %v2629
        %v2646 = vmul.f32 %v1533, %v2630
        %v2647 = vmul.f32 %v1533, %v2631
        %v2648 = vmul.f32 %v1533, %v2632
        %v2649 = vmul.f32 %v1533, %v2633
        %v2650 = vmul.f32 %v1533, %v2634
        %v2651 = vmul.f32 %v1533, %v2635
        %v2652 = vmul.f32 %v1533, %v2636
        %v2653 = vsel %vm2637, %v2629, %v2645
        %v2654 = vsel %vm2638, %v2630, %v2646
        %v2655 = vsel %vm2639, %v2631, %v2647
        %v2656 = vsel %vm2640, %v2632, %v2648
        %v2657 = vsel %vm2641, %v2633, %v2649
        %v2658 = vsel %vm2642, %v2634, %v2650
        %v2659 = vsel %vm2643, %v2635, %v2651
        %v2660 = vsel %vm2644, %v2636, %v2652
        %2661 = vst [vmem:[%s420] sm:$0xff] %v2653
        %2662 = vst [vmem:[%s420 + $0x8] sm:$0xff] %v2654
        %2663 = vst [vmem:[%s420 + $0x10] sm:$0xff] %v2655
        %2664 = vst [vmem:[%s420 + $0x18] sm:$0xff] %v2656
        %2665 = vst [vmem:[%s420 + $0x20] sm:$0xff] %v2657
        %2666 = vst [vmem:[%s420 + $0x28] sm:$0xff] %v2658
        %2667 = vst [vmem:[%s420 + $0x30] sm:$0xff] %v2659
        %2668 = vst [vmem:[%s420 + $0x38] sm:$0xff] %v2660
        %s2669 = sand.u32 %s292, 1
        %s2670 = scalar_lea.sflag [#allocation5], %s2669
        %s2671 = sand.u32 %s292, 1
        %s2672 = smul.addr %s2671, 64
        %s2673 = scalar_lea.vmem [#allocation7], %s2672
        // Predicated region
        $region73: #{tpu_custom_call.1} parent=67 // pred_check
          %p2674 = pneg %p302
        $region74: #{tpu_custom_call.1} parent=67 // pred_check_branch
          %2676 = sbr.rel (%p2674) target = $region76
        $region75: #{tpu_custom_call.1} parent=67 // pred_region
          %s2678 = ssub.s32 1024, 1024
          %2679 = vsyncadd %s2670, %s2678
          %s2680 = smul.addr %s27, 8
          %s2681 = smul.addr %s2680, 128
          %s2682 = scalar_lea.hbm %s12, %s2681
          %s2683 = sshll.u32 %s2673, 4
          %s2684 = int_to_ptr.vmem [resolvable:$true] %s2683
          %2689 = dma.vmem_to_hbm [thread:$0]  %s2684, 1024, %s2682, %s2670, 256, 256, 16
        $region76: #{tpu_custom_call.1} parent=67 // pred_fallthru
          _
      $region68: #{tpu_custom_call.1} parent=5 // pred_fallthru
        _
      %p2690 = scmp.le.s32.totalorder 2, %s22
      // Predicated region
      $region77: #{tpu_custom_call.1} parent=5 // pred_check
        %p2691 = pneg %p2690
      $region78: #{tpu_custom_call.1} parent=5 // pred_check_branch
        %2693 = sbr.rel (%p2691) target = $region80
      $region79: #{tpu_custom_call.1} parent=5 // pred_region
        %s2694 = ssub.s32 %s22, 2
        // Predicated region
        $region81: #{tpu_custom_call.1} parent=79 // pred_check
          %p2695 = pneg %p308
        $region82: #{tpu_custom_call.1} parent=79 // pred_check_branch
          %2697 = sbr.rel (%p2695) target = $region84
        $region83: #{tpu_custom_call.1} parent=79 // pred_region
          %s2698 = sand.u32 %s293, 1
          %s2699 = scalar_lea.sflag [#allocation5], %s2698
          %s2700 = sand.u32 %s293, 1
          %s2701 = smul.addr %s2700, 64
          %s2702 = scalar_lea.vmem [#allocation7], %s2701
          %2703 = dma.done %s2699, 1024
        $region84: #{tpu_custom_call.1} parent=79 // pred_fallthru
          _
      $region80: #{tpu_custom_call.1} parent=5 // pred_fallthru
        _
    $region6: #{tpu_custom_call.1} parent=1 // loop_footer
      %s26 = sadd.s32 1, %s22
    $region7: #{tpu_custom_call.1} parent=1 // loop_footer_branch
      %21 = sbr.rel target = $region3
    $region8: #{tpu_custom_call.1} parent=1 // loop_exit
      _
    %2704 = vsyncpa [#allocation5], 1
    %s2705 = scalar_lea.sflag [#allocation5], 1
    %2706 = vsyncpa %s2705, 1
    %2707 = vsyncpa [#allocation6], 1
    %s2708 = scalar_lea.sflag [#allocation6], 1
    %2709 = vsyncpa %s2708, 1

</llo_original>
